<compile_context>
chip_gen: v7x
topology: tpu7x:2x2x1
jax: 0.10.0
libtpu: 0.0.40
codegen_flags: <defaults>
</compile_context>

<pallas_src>
import functools

import jax
import jax.numpy as jnp
from jax.experimental import pallas as pl
from jax.experimental.pallas import tpu as pltpu

UNITS = 32        # hidden size of both LSTM layers
IN_FEAT = 3       # LSTM input feature size
OUT_FEAT = 3      # dense output size
SUBLANE = 8       # pad batch to a multiple of this
XCOLS = 8         # x features padded to 8: [x0, x1, x2, 1 (bias), 0, 0, 0, 0]
OUT_LANES = 128   # lane-dense output width (real outputs live in cols 0:3)


def _oil_kernel(x_ref, w_ref, out_ref, gxb_ref, h_ref, *, T, Bp, H):
    """x_ref: ((T+1)*Bp, 8); w_ref: packed weight slab; out_ref: (T*Bp, 128)."""
    H2, H4, H6, H8 = 2 * H, 4 * H, 6 * H, 8 * H

    # --- One-shot input/bias projection for all T+1 time slices. -------------
    # gxb[t] columns: [f0 f1 | i0 i1 | o0 o1 | g0 g1]; layer-0 cols hold
    # x_t @ Wih0 + b0, layer-1 cols hold b1 (constant).  Extra slice T (x_T=0)
    # supplies b1 for the final wavefront step.  Stored to VMEM scratch so the
    # whole slab is never live in vregs across the unrolled loop.
    w0p = w_ref[0:8, :]                                           # (8, 8H)
    gxb_ref[...] = jnp.dot(x_ref[...], w0p,
                           preferred_element_type=jnp.float32)    # ((T+1)*Bp, 8H)

    # Fused recurrent weight: rows 0:H act on h1, rows H:2H on h2.
    wc = w_ref[8:8 + H2, :]                                       # (2H, 8H)

    # --- Prologue: layer-0 cell for t=0 (h1_{-1}=0 -> no recurrent matmul). --
    g0p = gxb_ref[0:Bp, :]
    i0 = jax.nn.sigmoid(g0p[:, H2:H2 + H])
    o0 = jax.nn.sigmoid(g0p[:, H4:H4 + H])
    gg0 = jnp.tanh(g0p[:, H6:H6 + H])
    c1 = i0 * gg0
    h1 = o0 * jnp.tanh(c1)
    z = jnp.zeros((Bp, H), jnp.float32)
    hpack = jnp.concatenate([h1, z], axis=1)                      # [h1_0 | h2_{-1}=0]
    cpack = jnp.concatenate([c1, z], axis=1)                      # [c1_0 | c2_{-1}=0]

    # --- Wavefront recurrence: one fused MXU push per step (T=12 unrolled). --
    # m = [h1_t | h2_{t-1}] @ Wc yields layer-0 gates for t+1 (first col of
    # each 2H block) and layer-1 gates for t; adding gxb[t+1] supplies
    # x_{t+1}@Wih0+b0 and b1 respectively.
    for t in range(T):
        m = jnp.dot(hpack, wc, preferred_element_type=jnp.float32)    # (Bp, 8H)
        g = m + gxb_ref[(t + 1) * Bp:(t + 2) * Bp, :]
        sg = jax.nn.sigmoid(g[:, 0:H6])        # [f0 f1 | i0 i1 | o0 o1]
        tg = jnp.tanh(g[:, H6:H8])             # [g0 g1]
        cpack = sg[:, 0:H2] * cpack + sg[:, H2:H4] * tg   # -> [c1_{t+1} | c2_t]
        hpack = sg[:, H4:H6] * jnp.tanh(cpack)            # -> [h1_{t+1} | h2_t]
        h_ref[t * Bp:(t + 1) * Bp, :] = hpack

    # --- Dense head + ReLU, hoisted out of the loop, lane-dense output. ------
    wd = w_ref[8 + H2:8 + H4, 0:OUT_LANES]            # (2H, 128); h1 rows are zero
    bd = w_ref[8 + H4:8 + H4 + 1, 0:OUT_LANES]        # (1, 128)
    y = jnp.dot(h_ref[...], wd, preferred_element_type=jnp.float32) + bd
    out_ref[...] = jnp.maximum(y, 0.0)


def pack_params(params):
    """Pack all OilModel weights into one (8 + 4H + 8, 8H) f32 slab (done once)."""
    H = UNITS
    H4 = 4 * H
    f32 = jnp.float32

    def interleave(a, b):
        # a: layer-0 gate columns, b: layer-1 gate columns, both (*, 4H) in
        # PyTorch order [i, f, g, o]; output (*, 8H) in kernel order
        # [f0 f1 | i0 i1 | o0 o1 | g0 g1].
        blocks = []
        for gate in (1, 0, 3, 2):            # f, i, o, g
            blocks.append(a[:, gate * H:(gate + 1) * H])
            blocks.append(b[:, gate * H:(gate + 1) * H])
        return jnp.concatenate(blocks, axis=1)

    wih0 = params["w_ih_l0"].T.astype(f32)       # (3,  4H)
    whh0 = params["w_hh_l0"].T.astype(f32)       # (H,  4H)
    wih1 = params["w_ih_l1"].T.astype(f32)       # (H,  4H)
    whh1 = params["w_hh_l1"].T.astype(f32)       # (H,  4H)
    b0 = (params["b_ih_l0"] + params["b_hh_l0"]).reshape(1, H4).astype(f32)
    b1 = (params["b_ih_l1"] + params["b_hh_l1"]).reshape(1, H4).astype(f32)

    # Rows 0:8 — x-feature projection (rows 0:3) + bias ones-column (row 3).
    w0p = jnp.zeros((8, 8 * H), f32)
    w0p = w0p.at[0:IN_FEAT, :].set(interleave(wih0, jnp.zeros((IN_FEAT, H4), f32)))
    w0p = w0p.at[IN_FEAT:IN_FEAT + 1, :].set(interleave(b0, b1))

    # Rows 8:8+2H — fused recurrent weights [h1 rows ; h2 rows].
    wc = jnp.concatenate(
        [interleave(whh0, wih1),
         interleave(jnp.zeros((H, H4), f32), whh1)], axis=0)      # (2H, 8H)

    # Rows 8+2H:8+4H — dense head (h1 rows zero), only cols 0:128 are read.
    wd = jnp.zeros((2 * H, 8 * H), f32)
    wd = wd.at[H:2 * H, 0:OUT_FEAT].set(params["w_dense"].T.astype(f32))

    # Rows 8+4H:8+4H+8 — dense bias in row 0.
    bd = jnp.zeros((8, 8 * H), f32)
    bd = bd.at[0, 0:OUT_FEAT].set(params["b_dense"].astype(f32))

    return jnp.concatenate([w0p, wc, wd, bd], axis=0)             # (144, 256)


@jax.jit
def oil_forward(x, w_slab):
    """x: (B, T, 3) float32, w_slab from pack_params -> (B, T, 3) float32."""
    B, T, _ = x.shape
    H = UNITS
    Bp = ((B + SUBLANE - 1) // SUBLANE) * SUBLANE      # pad batch to sublane multiple

    # Time-major, batch-padded, feature-padded-to-8 input with a ones column
    # (folds both LSTM biases into the projection matmul) and one extra zero
    # time slice (supplies b1 for the final wavefront step).
    x_tm = jnp.transpose(x.astype(jnp.float32), (1, 0, 2))        # (T, B, 3)
    x_ext = jnp.zeros((T + 1, Bp, XCOLS), jnp.float32)
    x_ext = x_ext.at[:T, :B, :IN_FEAT].set(x_tm)
    x_ext = x_ext.at[:, :, IN_FEAT].set(1.0)
    x_ext = x_ext.reshape((T + 1) * Bp, XCOLS)

    vmem = pl.BlockSpec(memory_space=pltpu.MemorySpace.VMEM)
    out2d = pl.pallas_call(
        functools.partial(_oil_kernel, T=T, Bp=Bp, H=H),
        out_shape=jax.ShapeDtypeStruct((T * Bp, OUT_LANES), jnp.float32),
        in_specs=[vmem, vmem],
        out_specs=vmem,
        scratch_shapes=[
            pltpu.VMEM(((T + 1) * Bp, 8 * H), jnp.float32),   # gxb slab
            pltpu.VMEM((T * Bp, 2 * H), jnp.float32),         # per-step [h1|h2]
        ],
        # NOTE: at B=2 the kernel is latency-bound on one TensorCore; a
        # ("parallel",) batch grid for v7x's 2 TCs only pays off at large B.
    )(x_ext, w_slab)

    out = out2d[:, :OUT_FEAT].reshape(T, Bp, OUT_FEAT)[:, :B, :]  # drop padding
    return jnp.transpose(out, (1, 0, 2))                          # (B, T, 3)


def reference_forward(x, params):
    """Pure-JAX reference mirroring PyTorch nn.LSTM (2 layers) + Linear + ReLU."""
    H = UNITS
    B, T, _ = x.shape

    def cell(x_t, h, c, wih, whh, bih, bhh):
        g = x_t @ wih.T + bih + h @ whh.T + bhh
        i = jax.nn.sigmoid(g[:, :H])
        f = jax.nn.sigmoid(g[:, H:2 * H])
        gg = jnp.tanh(g[:, 2 * H:3 * H])
        o = jax.nn.sigmoid(g[:, 3 * H:])
        c = f * c + i * gg
        return o * jnp.tanh(c), c

    h1 = c1 = h2 = c2 = jnp.zeros((B, H), jnp.float32)
    outs = []
    for t in range(T):
        h1, c1 = cell(x[:, t], h1, c1, params["w_ih_l0"], params["w_hh_l0"],
                      params["b_ih_l0"], params["b_hh_l0"])
        h2, c2 = cell(h1, h2, c2, params["w_ih_l1"], params["w_hh_l1"],
                      params["b_ih_l1"], params["b_hh_l1"])
        outs.append(jnp.maximum(h2 @ params["w_dense"].T + params["b_dense"], 0.0))
    return jnp.stack(outs, axis=1)


def init_params(key, H=UNITS):
    """Deterministic init (uniform(-1/sqrt(H), 1/sqrt(H)), like PyTorch defaults)."""
    k = 1.0 / jnp.sqrt(jnp.float32(H))
    names_shapes = [
        ("w_ih_l0", (4 * H, IN_FEAT)), ("w_hh_l0", (4 * H, H)),
        ("b_ih_l0", (4 * H,)), ("b_hh_l0", (4 * H,)),
        ("w_ih_l1", (4 * H, H)), ("w_hh_l1", (4 * H, H)),
        ("b_ih_l1", (4 * H,)), ("b_hh_l1", (4 * H,)),
        ("w_dense", (OUT_FEAT, H)), ("b_dense", (OUT_FEAT,)),
    ]
    keys = jax.random.split(key, len(names_shapes))
    return {name: jax.random.uniform(kk, shape, jnp.float32, -k, k)
            for kk, (name, shape) in zip(keys, names_shapes)}


if __name__ == "__main__":
    key = jax.random.PRNGKey(0)
    pkey, xkey = jax.random.split(key)
    params = init_params(pkey)

    B, T = 2, 12                                  # timesteps=12 as in the module
    x = jax.random.normal(xkey, (B, T, IN_FEAT), jnp.float32)

    w_slab = pack_params(params)                  # one-time weight prep
    out = jax.block_until_ready(oil_forward(x, w_slab))
    ref = jax.block_until_ready(reference_forward(x, params))

    assert out.shape == (B, T, OUT_FEAT), out.shape
    assert jnp.allclose(out, ref, atol=1e-5, rtol=1e-5), float(jnp.abs(out - ref).max())
    print("KERNEL_OK")
</pallas_src>

<mosaic_0001>
module attributes {stable_mosaic.version = 11 : i64} {
  func.func @_oil_kernel(%arg0: memref<104x8xf32, #tpu.memory_space<vmem>>, %arg1: memref<144x256xf32, #tpu.memory_space<vmem>>, %arg2: memref<96x128xf32, #tpu.memory_space<vmem>>, %arg3: memref<104x256xf32, #tpu.memory_space<vmem>>, %arg4: memref<96x64xf32, #tpu.memory_space<vmem>>) attributes {dimension_semantics = [], scalar_prefetch = 0 : i64, scratch_operands = 2 : i64, tpu.core_type = #tpu.core_type<tc>} {
    %c0 = arith.constant 0 : index
    %c0_0 = arith.constant 0 : index
    %0 = vector.load %arg1[%c0, %c0_0] : memref<144x256xf32, #tpu.memory_space<vmem>>, vector<8x256xf32>
    %c0_1 = arith.constant 0 : index
    %c0_2 = arith.constant 0 : index
    %1 = vector.load %arg0[%c0_1, %c0_2] : memref<104x8xf32, #tpu.memory_space<vmem>>, vector<104x8xf32>
    %cst = arith.constant dense<0.000000e+00> : vector<104x256xf32>
    %2 = tpu.matmul %1, %0, %cst {dimension_numbers = #tpu.dot_dimension_numbers<[1], [0], [0], [1], [0, 0, 1, 1], [], []>} : vector<104x8xf32>, vector<8x256xf32>, vector<104x256xf32> -> vector<104x256xf32>
    %c0_3 = arith.constant 0 : index
    %c0_4 = arith.constant 0 : index
    %3 = vector.load %arg3[%c0_3, %c0_4] : memref<104x256xf32, #tpu.memory_space<vmem>>, vector<104x256xf32>
    tpu.vector_store %arg3[%c0_3, %c0_4], %2 {strides = array<i32>} : memref<104x256xf32, #tpu.memory_space<vmem>>, vector<104x256xf32>,
    %c8 = arith.constant 8 : index
    %c0_5 = arith.constant 0 : index
    %4 = vector.load %arg1[%c8, %c0_5] : memref<144x256xf32, #tpu.memory_space<vmem>>, vector<64x256xf32>
    %c0_6 = arith.constant 0 : index
    %c0_7 = arith.constant 0 : index
    %5 = vector.load %arg3[%c0_6, %c0_7] : memref<104x256xf32, #tpu.memory_space<vmem>>, vector<8x256xf32>
    %6 = vector.extract_strided_slice %5 {offsets = [0, 64], sizes = [8, 32], strides = [1, 1]} : vector<8x256xf32> to vector<8x32xf32>
    %7 = arith.negf %6 : vector<8x32xf32>
    %8 = math.exp %7 : vector<8x32xf32>
    %cst_8 = arith.constant 1.000000e+00 : f32
    %9 = vector.broadcast %cst_8 : f32 to vector<8x32xf32>
    %10 = arith.addf %9, %8 : vector<8x32xf32>
    %11 = arith.divf %9, %10 : vector<8x32xf32>
    %12 = vector.extract_strided_slice %5 {offsets = [0, 128], sizes = [8, 32], strides = [1, 1]} : vector<8x256xf32> to vector<8x32xf32>
    %13 = arith.negf %12 : vector<8x32xf32>
    %14 = math.exp %13 : vector<8x32xf32>
    %cst_9 = arith.constant 1.000000e+00 : f32
    %15 = vector.broadcast %cst_9 : f32 to vector<8x32xf32>
    %16 = arith.addf %15, %14 : vector<8x32xf32>
    %17 = arith.divf %15, %16 : vector<8x32xf32>
    %18 = vector.extract_strided_slice %5 {offsets = [0, 192], sizes = [8, 32], strides = [1, 1]} : vector<8x256xf32> to vector<8x32xf32>
    %19 = math.tanh %18 : vector<8x32xf32>
    %20 = arith.mulf %11, %19 : vector<8x32xf32>
    %21 = math.tanh %20 : vector<8x32xf32>
    %22 = arith.mulf %17, %21 : vector<8x32xf32>
    %cst_10 = arith.constant 0.000000e+00 : f32
    %23 = vector.broadcast %cst_10 : f32 to vector<8x32xf32>
    %24 = tpu.concatenate %22, %23 in 1 : vector<8x32xf32>, vector<8x32xf32> -> vector<8x64xf32>
    %25 = tpu.concatenate %20, %23 in 1 : vector<8x32xf32>, vector<8x32xf32> -> vector<8x64xf32>
    %cst_11 = arith.constant dense<0.000000e+00> : vector<8x256xf32>
    %26 = tpu.matmul %24, %4, %cst_11 {dimension_numbers = #tpu.dot_dimension_numbers<[1], [0], [0], [1], [0, 0, 1, 1], [], []>} : vector<8x64xf32>, vector<64x256xf32>, vector<8x256xf32> -> vector<8x256xf32>
    %c8_12 = arith.constant 8 : index
    %c0_13 = arith.constant 0 : index
    %27 = vector.load %arg3[%c8_12, %c0_13] : memref<104x256xf32, #tpu.memory_space<vmem>>, vector<8x256xf32>
    %28 = arith.addf %26, %27 : vector<8x256xf32>
    %29 = vector.extract_strided_slice %28 {offsets = [0, 0], sizes = [8, 192], strides = [1, 1]} : vector<8x256xf32> to vector<8x192xf32>
    %30 = arith.negf %29 : vector<8x192xf32>
    %31 = math.exp %30 : vector<8x192xf32>
    %cst_14 = arith.constant 1.000000e+00 : f32
    %32 = vector.broadcast %cst_14 : f32 to vector<8x192xf32>
    %33 = arith.addf %32, %31 : vector<8x192xf32>
    %34 = arith.divf %32, %33 : vector<8x192xf32>
    %35 = vector.extract_strided_slice %28 {offsets = [0, 192], sizes = [8, 64], strides = [1, 1]} : vector<8x256xf32> to vector<8x64xf32>
    %36 = math.tanh %35 : vector<8x64xf32>
    %37 = vector.extract_strided_slice %34 {offsets = [0, 0], sizes = [8, 64], strides = [1, 1]} : vector<8x192xf32> to vector<8x64xf32>
    %38 = arith.mulf %37, %25 : vector<8x64xf32>
    %39 = vector.extract_strided_slice %34 {offsets = [0, 64], sizes = [8, 64], strides = [1, 1]} : vector<8x192xf32> to vector<8x64xf32>
    %40 = arith.mulf %39, %36 : vector<8x64xf32>
    %41 = arith.addf %38, %40 : vector<8x64xf32>
    %42 = vector.extract_strided_slice %34 {offsets = [0, 128], sizes = [8, 64], strides = [1, 1]} : vector<8x192xf32> to vector<8x64xf32>
    %43 = math.tanh %41 : vector<8x64xf32>
    %44 = arith.mulf %42, %43 : vector<8x64xf32>
    %c0_15 = arith.constant 0 : index
    %c0_16 = arith.constant 0 : index
    %45 = vector.load %arg4[%c0_15, %c0_16] : memref<96x64xf32, #tpu.memory_space<vmem>>, vector<8x64xf32>
    tpu.vector_store %arg4[%c0_15, %c0_16], %44 {strides = array<i32>} : memref<96x64xf32, #tpu.memory_space<vmem>>, vector<8x64xf32>,
    %cst_17 = arith.constant dense<0.000000e+00> : vector<8x256xf32>
    %46 = tpu.matmul %44, %4, %cst_17 {dimension_numbers = #tpu.dot_dimension_numbers<[1], [0], [0], [1], [0, 0, 1, 1], [], []>} : vector<8x64xf32>, vector<64x256xf32>, vector<8x256xf32> -> vector<8x256xf32>
    %c16 = arith.constant 16 : index
    %c0_18 = arith.constant 0 : index
    %47 = vector.load %arg3[%c16, %c0_18] : memref<104x256xf32, #tpu.memory_space<vmem>>, vector<8x256xf32>
    %48 = arith.addf %46, %47 : vector<8x256xf32>
    %49 = vector.extract_strided_slice %48 {offsets = [0, 0], sizes = [8, 192], strides = [1, 1]} : vector<8x256xf32> to vector<8x192xf32>
    %50 = arith.negf %49 : vector<8x192xf32>
    %51 = math.exp %50 : vector<8x192xf32>
    %cst_19 = arith.constant 1.000000e+00 : f32
    %52 = vector.broadcast %cst_19 : f32 to vector<8x192xf32>
    %53 = arith.addf %52, %51 : vector<8x192xf32>
    %54 = arith.divf %52, %53 : vector<8x192xf32>
    %55 = vector.extract_strided_slice %48 {offsets = [0, 192], sizes = [8, 64], strides = [1, 1]} : vector<8x256xf32> to vector<8x64xf32>
    %56 = math.tanh %55 : vector<8x64xf32>
    %57 = vector.extract_strided_slice %54 {offsets = [0, 0], sizes = [8, 64], strides = [1, 1]} : vector<8x192xf32> to vector<8x64xf32>
    %58 = arith.mulf %57, %41 : vector<8x64xf32>
    %59 = vector.extract_strided_slice %54 {offsets = [0, 64], sizes = [8, 64], strides = [1, 1]} : vector<8x192xf32> to vector<8x64xf32>
    %60 = arith.mulf %59, %56 : vector<8x64xf32>
    %61 = arith.addf %58, %60 : vector<8x64xf32>
    %62 = vector.extract_strided_slice %54 {offsets = [0, 128], sizes = [8, 64], strides = [1, 1]} : vector<8x192xf32> to vector<8x64xf32>
    %63 = math.tanh %61 : vector<8x64xf32>
    %64 = arith.mulf %62, %63 : vector<8x64xf32>
    %c8_20 = arith.constant 8 : index
    %c0_21 = arith.constant 0 : index
    %65 = vector.load %arg4[%c8_20, %c0_21] : memref<96x64xf32, #tpu.memory_space<vmem>>, vector<8x64xf32>
    tpu.vector_store %arg4[%c8_20, %c0_21], %64 {strides = array<i32>} : memref<96x64xf32, #tpu.memory_space<vmem>>, vector<8x64xf32>,
    %cst_22 = arith.constant dense<0.000000e+00> : vector<8x256xf32>
    %66 = tpu.matmul %64, %4, %cst_22 {dimension_numbers = #tpu.dot_dimension_numbers<[1], [0], [0], [1], [0, 0, 1, 1], [], []>} : vector<8x64xf32>, vector<64x256xf32>, vector<8x256xf32> -> vector<8x256xf32>
    %c24 = arith.constant 24 : index
    %c0_23 = arith.constant 0 : index
    %67 = vector.load %arg3[%c24, %c0_23] : memref<104x256xf32, #tpu.memory_space<vmem>>, vector<8x256xf32>
    %68 = arith.addf %66, %67 : vector<8x256xf32>
    %69 = vector.extract_strided_slice %68 {offsets = [0, 0], sizes = [8, 192], strides = [1, 1]} : vector<8x256xf32> to vector<8x192xf32>
    %70 = arith.negf %69 : vector<8x192xf32>
    %71 = math.exp %70 : vector<8x192xf32>
    %cst_24 = arith.constant 1.000000e+00 : f32
    %72 = vector.broadcast %cst_24 : f32 to vector<8x192xf32>
    %73 = arith.addf %72, %71 : vector<8x192xf32>
    %74 = arith.divf %72, %73 : vector<8x192xf32>
    %75 = vector.extract_strided_slice %68 {offsets = [0, 192], sizes = [8, 64], strides = [1, 1]} : vector<8x256xf32> to vector<8x64xf32>
    %76 = math.tanh %75 : vector<8x64xf32>
    %77 = vector.extract_strided_slice %74 {offsets = [0, 0], sizes = [8, 64], strides = [1, 1]} : vector<8x192xf32> to vector<8x64xf32>
    %78 = arith.mulf %77, %61 : vector<8x64xf32>
    %79 = vector.extract_strided_slice %74 {offsets = [0, 64], sizes = [8, 64], strides = [1, 1]} : vector<8x192xf32> to vector<8x64xf32>
    %80 = arith.mulf %79, %76 : vector<8x64xf32>
    %81 = arith.addf %78, %80 : vector<8x64xf32>
    %82 = vector.extract_strided_slice %74 {offsets = [0, 128], sizes = [8, 64], strides = [1, 1]} : vector<8x192xf32> to vector<8x64xf32>
    %83 = math.tanh %81 : vector<8x64xf32>
    %84 = arith.mulf %82, %83 : vector<8x64xf32>
    %c16_25 = arith.constant 16 : index
    %c0_26 = arith.constant 0 : index
    %85 = vector.load %arg4[%c16_25, %c0_26] : memref<96x64xf32, #tpu.memory_space<vmem>>, vector<8x64xf32>
    tpu.vector_store %arg4[%c16_25, %c0_26], %84 {strides = array<i32>} : memref<96x64xf32, #tpu.memory_space<vmem>>, vector<8x64xf32>,
    %cst_27 = arith.constant dense<0.000000e+00> : vector<8x256xf32>
    %86 = tpu.matmul %84, %4, %cst_27 {dimension_numbers = #tpu.dot_dimension_numbers<[1], [0], [0], [1], [0, 0, 1, 1], [], []>} : vector<8x64xf32>, vector<64x256xf32>, vector<8x256xf32> -> vector<8x256xf32>
    %c32 = arith.constant 32 : index
    %c0_28 = arith.constant 0 : index
    %87 = vector.load %arg3[%c32, %c0_28] : memref<104x256xf32, #tpu.memory_space<vmem>>, vector<8x256xf32>
    %88 = arith.addf %86, %87 : vector<8x256xf32>
    %89 = vector.extract_strided_slice %88 {offsets = [0, 0], sizes = [8, 192], strides = [1, 1]} : vector<8x256xf32> to vector<8x192xf32>
    %90 = arith.negf %89 : vector<8x192xf32>
    %91 = math.exp %90 : vector<8x192xf32>
    %cst_29 = arith.constant 1.000000e+00 : f32
    %92 = vector.broadcast %cst_29 : f32 to vector<8x192xf32>
    %93 = arith.addf %92, %91 : vector<8x192xf32>
    %94 = arith.divf %92, %93 : vector<8x192xf32>
    %95 = vector.extract_strided_slice %88 {offsets = [0, 192], sizes = [8, 64], strides = [1, 1]} : vector<8x256xf32> to vector<8x64xf32>
    %96 = math.tanh %95 : vector<8x64xf32>
    %97 = vector.extract_strided_slice %94 {offsets = [0, 0], sizes = [8, 64], strides = [1, 1]} : vector<8x192xf32> to vector<8x64xf32>
    %98 = arith.mulf %97, %81 : vector<8x64xf32>
    %99 = vector.extract_strided_slice %94 {offsets = [0, 64], sizes = [8, 64], strides = [1, 1]} : vector<8x192xf32> to vector<8x64xf32>
    %100 = arith.mulf %99, %96 : vector<8x64xf32>
    %101 = arith.addf %98, %100 : vector<8x64xf32>
    %102 = vector.extract_strided_slice %94 {offsets = [0, 128], sizes = [8, 64], strides = [1, 1]} : vector<8x192xf32> to vector<8x64xf32>
    %103 = math.tanh %101 : vector<8x64xf32>
    %104 = arith.mulf %102, %103 : vector<8x64xf32>
    %c24_30 = arith.constant 24 : index
    %c0_31 = arith.constant 0 : index
    %105 = vector.load %arg4[%c24_30, %c0_31] : memref<96x64xf32, #tpu.memory_space<vmem>>, vector<8x64xf32>
    tpu.vector_store %arg4[%c24_30, %c0_31], %104 {strides = array<i32>} : memref<96x64xf32, #tpu.memory_space<vmem>>, vector<8x64xf32>,
    %cst_32 = arith.constant dense<0.000000e+00> : vector<8x256xf32>
    %106 = tpu.matmul %104, %4, %cst_32 {dimension_numbers = #tpu.dot_dimension_numbers<[1], [0], [0], [1], [0, 0, 1, 1], [], []>} : vector<8x64xf32>, vector<64x256xf32>, vector<8x256xf32> -> vector<8x256xf32>
    %c40 = arith.constant 40 : index
    %c0_33 = arith.constant 0 : index
    %107 = vector.load %arg3[%c40, %c0_33] : memref<104x256xf32, #tpu.memory_space<vmem>>, vector<8x256xf32>
    %108 = arith.addf %106, %107 : vector<8x256xf32>
    %109 = vector.extract_strided_slice %108 {offsets = [0, 0], sizes = [8, 192], strides = [1, 1]} : vector<8x256xf32> to vector<8x192xf32>
    %110 = arith.negf %109 : vector<8x192xf32>
    %111 = math.exp %110 : vector<8x192xf32>
    %cst_34 = arith.constant 1.000000e+00 : f32
    %112 = vector.broadcast %cst_34 : f32 to vector<8x192xf32>
    %113 = arith.addf %112, %111 : vector<8x192xf32>
    %114 = arith.divf %112, %113 : vector<8x192xf32>
    %115 = vector.extract_strided_slice %108 {offsets = [0, 192], sizes = [8, 64], strides = [1, 1]} : vector<8x256xf32> to vector<8x64xf32>
    %116 = math.tanh %115 : vector<8x64xf32>
    %117 = vector.extract_strided_slice %114 {offsets = [0, 0], sizes = [8, 64], strides = [1, 1]} : vector<8x192xf32> to vector<8x64xf32>
    %118 = arith.mulf %117, %101 : vector<8x64xf32>
    %119 = vector.extract_strided_slice %114 {offsets = [0, 64], sizes = [8, 64], strides = [1, 1]} : vector<8x192xf32> to vector<8x64xf32>
    %120 = arith.mulf %119, %116 : vector<8x64xf32>
    %121 = arith.addf %118, %120 : vector<8x64xf32>
    %122 = vector.extract_strided_slice %114 {offsets = [0, 128], sizes = [8, 64], strides = [1, 1]} : vector<8x192xf32> to vector<8x64xf32>
    %123 = math.tanh %121 : vector<8x64xf32>
    %124 = arith.mulf %122, %123 : vector<8x64xf32>
    %c32_35 = arith.constant 32 : index
    %c0_36 = arith.constant 0 : index
    %125 = vector.load %arg4[%c32_35, %c0_36] : memref<96x64xf32, #tpu.memory_space<vmem>>, vector<8x64xf32>
    tpu.vector_store %arg4[%c32_35, %c0_36], %124 {strides = array<i32>} : memref<96x64xf32, #tpu.memory_space<vmem>>, vector<8x64xf32>,
    %cst_37 = arith.constant dense<0.000000e+00> : vector<8x256xf32>
    %126 = tpu.matmul %124, %4, %cst_37 {dimension_numbers = #tpu.dot_dimension_numbers<[1], [0], [0], [1], [0, 0, 1, 1], [], []>} : vector<8x64xf32>, vector<64x256xf32>, vector<8x256xf32> -> vector<8x256xf32>
    %c48 = arith.constant 48 : index
    %c0_38 = arith.constant 0 : index
    %127 = vector.load %arg3[%c48, %c0_38] : memref<104x256xf32, #tpu.memory_space<vmem>>, vector<8x256xf32>
    %128 = arith.addf %126, %127 : vector<8x256xf32>
    %129 = vector.extract_strided_slice %128 {offsets = [0, 0], sizes = [8, 192], strides = [1, 1]} : vector<8x256xf32> to vector<8x192xf32>
    %130 = arith.negf %129 : vector<8x192xf32>
    %131 = math.exp %130 : vector<8x192xf32>
    %cst_39 = arith.constant 1.000000e+00 : f32
    %132 = vector.broadcast %cst_39 : f32 to vector<8x192xf32>
    %133 = arith.addf %132, %131 : vector<8x192xf32>
    %134 = arith.divf %132, %133 : vector<8x192xf32>
    %135 = vector.extract_strided_slice %128 {offsets = [0, 192], sizes = [8, 64], strides = [1, 1]} : vector<8x256xf32> to vector<8x64xf32>
    %136 = math.tanh %135 : vector<8x64xf32>
    %137 = vector.extract_strided_slice %134 {offsets = [0, 0], sizes = [8, 64], strides = [1, 1]} : vector<8x192xf32> to vector<8x64xf32>
    %138 = arith.mulf %137, %121 : vector<8x64xf32>
    %139 = vector.extract_strided_slice %134 {offsets = [0, 64], sizes = [8, 64], strides = [1, 1]} : vector<8x192xf32> to vector<8x64xf32>
    %140 = arith.mulf %139, %136 : vector<8x64xf32>
    %141 = arith.addf %138, %140 : vector<8x64xf32>
    %142 = vector.extract_strided_slice %134 {offsets = [0, 128], sizes = [8, 64], strides = [1, 1]} : vector<8x192xf32> to vector<8x64xf32>
    %143 = math.tanh %141 : vector<8x64xf32>
    %144 = arith.mulf %142, %143 : vector<8x64xf32>
    %c40_40 = arith.constant 40 : index
    %c0_41 = arith.constant 0 : index
    %145 = vector.load %arg4[%c40_40, %c0_41] : memref<96x64xf32, #tpu.memory_space<vmem>>, vector<8x64xf32>
    tpu.vector_store %arg4[%c40_40, %c0_41], %144 {strides = array<i32>} : memref<96x64xf32, #tpu.memory_space<vmem>>, vector<8x64xf32>,
    %cst_42 = arith.constant dense<0.000000e+00> : vector<8x256xf32>
    %146 = tpu.matmul %144, %4, %cst_42 {dimension_numbers = #tpu.dot_dimension_numbers<[1], [0], [0], [1], [0, 0, 1, 1], [], []>} : vector<8x64xf32>, vector<64x256xf32>, vector<8x256xf32> -> vector<8x256xf32>
    %c56 = arith.constant 56 : index
    %c0_43 = arith.constant 0 : index
    %147 = vector.load %arg3[%c56, %c0_43] : memref<104x256xf32, #tpu.memory_space<vmem>>, vector<8x256xf32>
    %148 = arith.addf %146, %147 : vector<8x256xf32>
    %149 = vector.extract_strided_slice %148 {offsets = [0, 0], sizes = [8, 192], strides = [1, 1]} : vector<8x256xf32> to vector<8x192xf32>
    %150 = arith.negf %149 : vector<8x192xf32>
    %151 = math.exp %150 : vector<8x192xf32>
    %cst_44 = arith.constant 1.000000e+00 : f32
    %152 = vector.broadcast %cst_44 : f32 to vector<8x192xf32>
    %153 = arith.addf %152, %151 : vector<8x192xf32>
    %154 = arith.divf %152, %153 : vector<8x192xf32>
    %155 = vector.extract_strided_slice %148 {offsets = [0, 192], sizes = [8, 64], strides = [1, 1]} : vector<8x256xf32> to vector<8x64xf32>
    %156 = math.tanh %155 : vector<8x64xf32>
    %157 = vector.extract_strided_slice %154 {offsets = [0, 0], sizes = [8, 64], strides = [1, 1]} : vector<8x192xf32> to vector<8x64xf32>
    %158 = arith.mulf %157, %141 : vector<8x64xf32>
    %159 = vector.extract_strided_slice %154 {offsets = [0, 64], sizes = [8, 64], strides = [1, 1]} : vector<8x192xf32> to vector<8x64xf32>
    %160 = arith.mulf %159, %156 : vector<8x64xf32>
    %161 = arith.addf %158, %160 : vector<8x64xf32>
    %162 = vector.extract_strided_slice %154 {offsets = [0, 128], sizes = [8, 64], strides = [1, 1]} : vector<8x192xf32> to vector<8x64xf32>
    %163 = math.tanh %161 : vector<8x64xf32>
    %164 = arith.mulf %162, %163 : vector<8x64xf32>
    %c48_45 = arith.constant 48 : index
    %c0_46 = arith.constant 0 : index
    %165 = vector.load %arg4[%c48_45, %c0_46] : memref<96x64xf32, #tpu.memory_space<vmem>>, vector<8x64xf32>
    tpu.vector_store %arg4[%c48_45, %c0_46], %164 {strides = array<i32>} : memref<96x64xf32, #tpu.memory_space<vmem>>, vector<8x64xf32>,
    %cst_47 = arith.constant dense<0.000000e+00> : vector<8x256xf32>
    %166 = tpu.matmul %164, %4, %cst_47 {dimension_numbers = #tpu.dot_dimension_numbers<[1], [0], [0], [1], [0, 0, 1, 1], [], []>} : vector<8x64xf32>, vector<64x256xf32>, vector<8x256xf32> -> vector<8x256xf32>
    %c64 = arith.constant 64 : index
    %c0_48 = arith.constant 0 : index
    %167 = vector.load %arg3[%c64, %c0_48] : memref<104x256xf32, #tpu.memory_space<vmem>>, vector<8x256xf32>
    %168 = arith.addf %166, %167 : vector<8x256xf32>
    %169 = vector.extract_strided_slice %168 {offsets = [0, 0], sizes = [8, 192], strides = [1, 1]} : vector<8x256xf32> to vector<8x192xf32>
    %170 = arith.negf %169 : vector<8x192xf32>
    %171 = math.exp %170 : vector<8x192xf32>
    %cst_49 = arith.constant 1.000000e+00 : f32
    %172 = vector.broadcast %cst_49 : f32 to vector<8x192xf32>
    %173 = arith.addf %172, %171 : vector<8x192xf32>
    %174 = arith.divf %172, %173 : vector<8x192xf32>
    %175 = vector.extract_strided_slice %168 {offsets = [0, 192], sizes = [8, 64], strides = [1, 1]} : vector<8x256xf32> to vector<8x64xf32>
    %176 = math.tanh %175 : vector<8x64xf32>
    %177 = vector.extract_strided_slice %174 {offsets = [0, 0], sizes = [8, 64], strides = [1, 1]} : vector<8x192xf32> to vector<8x64xf32>
    %178 = arith.mulf %177, %161 : vector<8x64xf32>
    %179 = vector.extract_strided_slice %174 {offsets = [0, 64], sizes = [8, 64], strides = [1, 1]} : vector<8x192xf32> to vector<8x64xf32>
    %180 = arith.mulf %179, %176 : vector<8x64xf32>
    %181 = arith.addf %178, %180 : vector<8x64xf32>
    %182 = vector.extract_strided_slice %174 {offsets = [0, 128], sizes = [8, 64], strides = [1, 1]} : vector<8x192xf32> to vector<8x64xf32>
    %183 = math.tanh %181 : vector<8x64xf32>
    %184 = arith.mulf %182, %183 : vector<8x64xf32>
    %c56_50 = arith.constant 56 : index
    %c0_51 = arith.constant 0 : index
    %185 = vector.load %arg4[%c56_50, %c0_51] : memref<96x64xf32, #tpu.memory_space<vmem>>, vector<8x64xf32>
    tpu.vector_store %arg4[%c56_50, %c0_51], %184 {strides = array<i32>} : memref<96x64xf32, #tpu.memory_space<vmem>>, vector<8x64xf32>,
    %cst_52 = arith.constant dense<0.000000e+00> : vector<8x256xf32>
    %186 = tpu.matmul %184, %4, %cst_52 {dimension_numbers = #tpu.dot_dimension_numbers<[1], [0], [0], [1], [0, 0, 1, 1], [], []>} : vector<8x64xf32>, vector<64x256xf32>, vector<8x256xf32> -> vector<8x256xf32>
    %c72 = arith.constant 72 : index
    %c0_53 = arith.constant 0 : index
    %187 = vector.load %arg3[%c72, %c0_53] : memref<104x256xf32, #tpu.memory_space<vmem>>, vector<8x256xf32>
    %188 = arith.addf %186, %187 : vector<8x256xf32>
    %189 = vector.extract_strided_slice %188 {offsets = [0, 0], sizes = [8, 192], strides = [1, 1]} : vector<8x256xf32> to vector<8x192xf32>
    %190 = arith.negf %189 : vector<8x192xf32>
    %191 = math.exp %190 : vector<8x192xf32>
    %cst_54 = arith.constant 1.000000e+00 : f32
    %192 = vector.broadcast %cst_54 : f32 to vector<8x192xf32>
    %193 = arith.addf %192, %191 : vector<8x192xf32>
    %194 = arith.divf %192, %193 : vector<8x192xf32>
    %195 = vector.extract_strided_slice %188 {offsets = [0, 192], sizes = [8, 64], strides = [1, 1]} : vector<8x256xf32> to vector<8x64xf32>
    %196 = math.tanh %195 : vector<8x64xf32>
    %197 = vector.extract_strided_slice %194 {offsets = [0, 0], sizes = [8, 64], strides = [1, 1]} : vector<8x192xf32> to vector<8x64xf32>
    %198 = arith.mulf %197, %181 : vector<8x64xf32>
    %199 = vector.extract_strided_slice %194 {offsets = [0, 64], sizes = [8, 64], strides = [1, 1]} : vector<8x192xf32> to vector<8x64xf32>
    %200 = arith.mulf %199, %196 : vector<8x64xf32>
    %201 = arith.addf %198, %200 : vector<8x64xf32>
    %202 = vector.extract_strided_slice %194 {offsets = [0, 128], sizes = [8, 64], strides = [1, 1]} : vector<8x192xf32> to vector<8x64xf32>
    %203 = math.tanh %201 : vector<8x64xf32>
    %204 = arith.mulf %202, %203 : vector<8x64xf32>
    %c64_55 = arith.constant 64 : index
    %c0_56 = arith.constant 0 : index
    %205 = vector.load %arg4[%c64_55, %c0_56] : memref<96x64xf32, #tpu.memory_space<vmem>>, vector<8x64xf32>
    tpu.vector_store %arg4[%c64_55, %c0_56], %204 {strides = array<i32>} : memref<96x64xf32, #tpu.memory_space<vmem>>, vector<8x64xf32>,
    %cst_57 = arith.constant dense<0.000000e+00> : vector<8x256xf32>
    %206 = tpu.matmul %204, %4, %cst_57 {dimension_numbers = #tpu.dot_dimension_numbers<[1], [0], [0], [1], [0, 0, 1, 1], [], []>} : vector<8x64xf32>, vector<64x256xf32>, vector<8x256xf32> -> vector<8x256xf32>
    %c80 = arith.constant 80 : index
    %c0_58 = arith.constant 0 : index
    %207 = vector.load %arg3[%c80, %c0_58] : memref<104x256xf32, #tpu.memory_space<vmem>>, vector<8x256xf32>
    %208 = arith.addf %206, %207 : vector<8x256xf32>
    %209 = vector.extract_strided_slice %208 {offsets = [0, 0], sizes = [8, 192], strides = [1, 1]} : vector<8x256xf32> to vector<8x192xf32>
    %210 = arith.negf %209 : vector<8x192xf32>
    %211 = math.exp %210 : vector<8x192xf32>
    %cst_59 = arith.constant 1.000000e+00 : f32
    %212 = vector.broadcast %cst_59 : f32 to vector<8x192xf32>
    %213 = arith.addf %212, %211 : vector<8x192xf32>
    %214 = arith.divf %212, %213 : vector<8x192xf32>
    %215 = vector.extract_strided_slice %208 {offsets = [0, 192], sizes = [8, 64], strides = [1, 1]} : vector<8x256xf32> to vector<8x64xf32>
    %216 = math.tanh %215 : vector<8x64xf32>
    %217 = vector.extract_strided_slice %214 {offsets = [0, 0], sizes = [8, 64], strides = [1, 1]} : vector<8x192xf32> to vector<8x64xf32>
    %218 = arith.mulf %217, %201 : vector<8x64xf32>
    %219 = vector.extract_strided_slice %214 {offsets = [0, 64], sizes = [8, 64], strides = [1, 1]} : vector<8x192xf32> to vector<8x64xf32>
    %220 = arith.mulf %219, %216 : vector<8x64xf32>
    %221 = arith.addf %218, %220 : vector<8x64xf32>
    %222 = vector.extract_strided_slice %214 {offsets = [0, 128], sizes = [8, 64], strides = [1, 1]} : vector<8x192xf32> to vector<8x64xf32>
    %223 = math.tanh %221 : vector<8x64xf32>
    %224 = arith.mulf %222, %223 : vector<8x64xf32>
    %c72_60 = arith.constant 72 : index
    %c0_61 = arith.constant 0 : index
    %225 = vector.load %arg4[%c72_60, %c0_61] : memref<96x64xf32, #tpu.memory_space<vmem>>, vector<8x64xf32>
    tpu.vector_store %arg4[%c72_60, %c0_61], %224 {strides = array<i32>} : memref<96x64xf32, #tpu.memory_space<vmem>>, vector<8x64xf32>,
    %cst_62 = arith.constant dense<0.000000e+00> : vector<8x256xf32>
    %226 = tpu.matmul %224, %4, %cst_62 {dimension_numbers = #tpu.dot_dimension_numbers<[1], [0], [0], [1], [0, 0, 1, 1], [], []>} : vector<8x64xf32>, vector<64x256xf32>, vector<8x256xf32> -> vector<8x256xf32>
    %c88 = arith.constant 88 : index
    %c0_63 = arith.constant 0 : index
    %227 = vector.load %arg3[%c88, %c0_63] : memref<104x256xf32, #tpu.memory_space<vmem>>, vector<8x256xf32>
    %228 = arith.addf %226, %227 : vector<8x256xf32>
    %229 = vector.extract_strided_slice %228 {offsets = [0, 0], sizes = [8, 192], strides = [1, 1]} : vector<8x256xf32> to vector<8x192xf32>
    %230 = arith.negf %229 : vector<8x192xf32>
    %231 = math.exp %230 : vector<8x192xf32>
    %cst_64 = arith.constant 1.000000e+00 : f32
    %232 = vector.broadcast %cst_64 : f32 to vector<8x192xf32>
    %233 = arith.addf %232, %231 : vector<8x192xf32>
    %234 = arith.divf %232, %233 : vector<8x192xf32>
    %235 = vector.extract_strided_slice %228 {offsets = [0, 192], sizes = [8, 64], strides = [1, 1]} : vector<8x256xf32> to vector<8x64xf32>
    %236 = math.tanh %235 : vector<8x64xf32>
    %237 = vector.extract_strided_slice %234 {offsets = [0, 0], sizes = [8, 64], strides = [1, 1]} : vector<8x192xf32> to vector<8x64xf32>
    %238 = arith.mulf %237, %221 : vector<8x64xf32>
    %239 = vector.extract_strided_slice %234 {offsets = [0, 64], sizes = [8, 64], strides = [1, 1]} : vector<8x192xf32> to vector<8x64xf32>
    %240 = arith.mulf %239, %236 : vector<8x64xf32>
    %241 = arith.addf %238, %240 : vector<8x64xf32>
    %242 = vector.extract_strided_slice %234 {offsets = [0, 128], sizes = [8, 64], strides = [1, 1]} : vector<8x192xf32> to vector<8x64xf32>
    %243 = math.tanh %241 : vector<8x64xf32>
    %244 = arith.mulf %242, %243 : vector<8x64xf32>
    %c80_65 = arith.constant 80 : index
    %c0_66 = arith.constant 0 : index
    %245 = vector.load %arg4[%c80_65, %c0_66] : memref<96x64xf32, #tpu.memory_space<vmem>>, vector<8x64xf32>
    tpu.vector_store %arg4[%c80_65, %c0_66], %244 {strides = array<i32>} : memref<96x64xf32, #tpu.memory_space<vmem>>, vector<8x64xf32>,
    %cst_67 = arith.constant dense<0.000000e+00> : vector<8x256xf32>
    %246 = tpu.matmul %244, %4, %cst_67 {dimension_numbers = #tpu.dot_dimension_numbers<[1], [0], [0], [1], [0, 0, 1, 1], [], []>} : vector<8x64xf32>, vector<64x256xf32>, vector<8x256xf32> -> vector<8x256xf32>
    %c96 = arith.constant 96 : index
    %c0_68 = arith.constant 0 : index
    %247 = vector.load %arg3[%c96, %c0_68] : memref<104x256xf32, #tpu.memory_space<vmem>>, vector<8x256xf32>
    %248 = arith.addf %246, %247 : vector<8x256xf32>
    %249 = vector.extract_strided_slice %248 {offsets = [0, 0], sizes = [8, 192], strides = [1, 1]} : vector<8x256xf32> to vector<8x192xf32>
    %250 = arith.negf %249 : vector<8x192xf32>
    %251 = math.exp %250 : vector<8x192xf32>
    %cst_69 = arith.constant 1.000000e+00 : f32
    %252 = vector.broadcast %cst_69 : f32 to vector<8x192xf32>
    %253 = arith.addf %252, %251 : vector<8x192xf32>
    %254 = arith.divf %252, %253 : vector<8x192xf32>
    %255 = vector.extract_strided_slice %248 {offsets = [0, 192], sizes = [8, 64], strides = [1, 1]} : vector<8x256xf32> to vector<8x64xf32>
    %256 = math.tanh %255 : vector<8x64xf32>
    %257 = vector.extract_strided_slice %254 {offsets = [0, 0], sizes = [8, 64], strides = [1, 1]} : vector<8x192xf32> to vector<8x64xf32>
    %258 = arith.mulf %257, %241 : vector<8x64xf32>
    %259 = vector.extract_strided_slice %254 {offsets = [0, 64], sizes = [8, 64], strides = [1, 1]} : vector<8x192xf32> to vector<8x64xf32>
    %260 = arith.mulf %259, %256 : vector<8x64xf32>
    %261 = arith.addf %258, %260 : vector<8x64xf32>
    %262 = vector.extract_strided_slice %254 {offsets = [0, 128], sizes = [8, 64], strides = [1, 1]} : vector<8x192xf32> to vector<8x64xf32>
    %263 = math.tanh %261 : vector<8x64xf32>
    %264 = arith.mulf %262, %263 : vector<8x64xf32>
    %c88_70 = arith.constant 88 : index
    %c0_71 = arith.constant 0 : index
    %265 = vector.load %arg4[%c88_70, %c0_71] : memref<96x64xf32, #tpu.memory_space<vmem>>, vector<8x64xf32>
    tpu.vector_store %arg4[%c88_70, %c0_71], %264 {strides = array<i32>} : memref<96x64xf32, #tpu.memory_space<vmem>>, vector<8x64xf32>,
    %c72_72 = arith.constant 72 : index
    %c0_73 = arith.constant 0 : index
    %266 = vector.load %arg1[%c72_72, %c0_73] : memref<144x256xf32, #tpu.memory_space<vmem>>, vector<64x128xf32>
    %c136 = arith.constant 136 : index
    %c0_74 = arith.constant 0 : index
    %267 = vector.load %arg1[%c136, %c0_74] : memref<144x256xf32, #tpu.memory_space<vmem>>, vector<1x128xf32>
    %c0_75 = arith.constant 0 : index
    %c0_76 = arith.constant 0 : index
    %268 = vector.load %arg4[%c0_75, %c0_76] : memref<96x64xf32, #tpu.memory_space<vmem>>, vector<96x64xf32>
    %cst_77 = arith.constant dense<0.000000e+00> : vector<96x128xf32>
    %269 = tpu.matmul %268, %266, %cst_77 {dimension_numbers = #tpu.dot_dimension_numbers<[1], [0], [0], [1], [0, 0, 1, 1], [], []>} : vector<96x64xf32>, vector<64x128xf32>, vector<96x128xf32> -> vector<96x128xf32>
    %270 = vector.broadcast %267 : vector<1x128xf32> to vector<96x128xf32>
    %271 = arith.addf %269, %270 : vector<96x128xf32>
    %cst_78 = arith.constant 0.000000e+00 : f32
    %272 = vector.broadcast %cst_78 : f32 to vector<96x128xf32>
    %273 = arith.maximumf %271, %272 : vector<96x128xf32>
    %c0_79 = arith.constant 0 : index
    %c0_80 = arith.constant 0 : index
    %274 = vector.load %arg2[%c0_79, %c0_80] : memref<96x128xf32, #tpu.memory_space<vmem>>, vector<96x128xf32>
    tpu.vector_store %arg2[%c0_79, %c0_80], %273 {strides = array<i32>} : memref<96x128xf32, #tpu.memory_space<vmem>>, vector<96x128xf32>,
    return
  }
}

</mosaic_0001>

<llo_original>
// kernel: oil_forward.1
$region0: #{oil_forward.1}
  #allocation0 [shape = 'u32[]', space=smem, size = 0x4, offset = 0x4, fixed_abs, tag = 'smem constant byte address 0x4 - core index']
  #allocation1 [shape = 'u32[144,128]{1,0:T(1,128)}', space=vmem, size = 0x12000, scoped, tag = 'internal scratch']
  #allocation2 [shape = 'f32[104,256]{1,0:T(8,128)}', space=vmem, size = 0x1a000, scoped, tag = 'scratch operand']
  #allocation3 [shape = 'f32[96,64]{1,0:T(8,128)}', space=vmem, size = 0xc000, scoped, tag = 'scratch operand']
  %s0 = inlined_call_operand.vmem [shape: f32[104,8], index: 0, kind: input, shape index: {}]
  %s1 = inlined_call_operand.hbm [shape: f32[144,256], index: 1, kind: input, shape index: {}]
  %s2 = inlined_call_operand.vmem [shape: f32[96,128], index: 2, kind: output, shape index: {}]
  %s3 = sld [smem:[#allocation0]]
  $region22: #{oil_forward.1} parent=0
    _
  %s5 = ssub.s32 1, %s3
  %s6 = scalar_select 0, %s5, %s3
  $region1: #{oil_forward.1} parent=0
    #allocation4 [shape = 'u8[147456]{0}', space=vmem, size = 0x24000, scoped, tag = 'input window, operand 1, single buffered']
    #allocation5 [shape = 's32[1]{0}', space=sflag, size = 0x4, scoped, tag = 'scoped memory for oil_forward.1']
    %7 = vsyncpa [#allocation5], 0
    // Predicated region
    $region2: #{oil_forward.1} parent=1 // pred_check
      _
    $region3: #{oil_forward.1} parent=1 // pred_check_branch
      %9 = sbr.rel (0) target = $region5
    $region4: #{oil_forward.1} parent=1 // pred_region
      _
    $region5: #{oil_forward.1} parent=1 // pred_fallthru
      _
    // Predicated region
    $region6: #{oil_forward.1} parent=1 // pred_check
      _
    $region7: #{oil_forward.1} parent=1 // pred_check_branch
      %11 = sbr.rel (0) target = $region9
    $region8: #{oil_forward.1} parent=1 // pred_region
      %s13 = ssub.s32 4608, 4608
      %14 = vsyncadd [#allocation5], %s13
      %s15 = sshll.u32 [#allocation4], 4
      %s16 = int_to_ptr.vmem [resolvable:$true] %s15
      %21 = dma.hbm_to_vmem [thread:$0]  %s1, 4608, %s16, [#allocation5], 256, 256, 16
    $region9: #{oil_forward.1} parent=1 // pred_fallthru
      _
    // Predicated region
    $region10: #{oil_forward.1} parent=1 // pred_check
      _
    $region11: #{oil_forward.1} parent=1 // pred_check_branch
      %23 = sbr.rel (0) target = $region13
    $region12: #{oil_forward.1} parent=1 // pred_region
      %24 = dma.done [#allocation5], 4608
    $region13: #{oil_forward.1} parent=1 // pred_fallthru
      _
    %v25 = vld [vmem:[#allocation4] sm:$0xff]
    %v26 = vld [vmem:[#allocation4 + $0x8] sm:$0xff]
    %v27 = vld [vmem:[%s0] sm:$0xff]
    %v28 = vld [vmem:[%s0 + $0x8] sm:$0xff]
    %v29 = vld [vmem:[%s0 + $0x10] sm:$0xff]
    %v30 = vld [vmem:[%s0 + $0x18] sm:$0xff]
    %v31 = vld [vmem:[%s0 + $0x20] sm:$0xff]
    %v32 = vld [vmem:[%s0 + $0x28] sm:$0xff]
    %v33 = vld [vmem:[%s0 + $0x30] sm:$0xff]
    %v34 = vld [vmem:[%s0 + $0x38] sm:$0xff]
    %v35 = vld [vmem:[%s0 + $0x40] sm:$0xff]
    %v36 = vld [vmem:[%s0 + $0x48] sm:$0xff]
    %v37 = vld [vmem:[%s0 + $0x50] sm:$0xff]
    %v38 = vld [vmem:[%s0 + $0x58] sm:$0xff]
    %v39 = vld [vmem:[%s0 + $0x60] sm:$0xff]
    %vm40 = vcmask 64512
    %v42 = vsel %vm40, %v27, 0
    %v45 = vsel %vm40, %v28, 0
    %v48 = vsel %vm40, %v29, 0
    %v51 = vsel %vm40, %v30, 0
    %v54 = vsel %vm40, %v31, 0
    %v57 = vsel %vm40, %v32, 0
    %v60 = vsel %vm40, %v33, 0
    %v63 = vsel %vm40, %v34, 0
    %v66 = vsel %vm40, %v35, 0
    %v69 = vsel %vm40, %v36, 0
    %v72 = vsel %vm40, %v37, 0
    %v75 = vsel %vm40, %v38, 0
    %v78 = vsel %vm40, %v39, 0
    %80 = vmatprep.subr.mxu0 %v26
    %81 = vmatpush1.msra.mxu0 %v25
    %82 = vmatprep.subr.mxu0 0.0
    %83 = vmatpush1.msra.mxu0 0.0
    %84 = vmatprep.subr.mxu0 0.0
    %85 = vmatpush1.msra.mxu0 0.0
    %86 = vmatprep.subr.mxu0 0.0
    %87 = vmatpush1.msra.mxu0 0.0
    %88 = vmatprep.subr.mxu0 0.0
    %89 = vmatpush1.msra.mxu0 0.0
    %90 = vmatprep.subr.mxu0 0.0
    %91 = vmatpush1.msra.mxu0 0.0
    %92 = vmatprep.subr.mxu0 0.0
    %93 = vmatpush1.msra.mxu0 0.0
    %94 = vmatprep.subr.mxu0 0.0
    %95 = vmatpush1.msra.mxu0 0.0
    %96 = vmatprep.subr.mxu0 0.0
    %97 = vmatpush1.msra.mxu0 0.0
    %98 = vmatprep.subr.mxu0 0.0
    %99 = vmatpush1.msra.mxu0 0.0
    %100 = vmatprep.subr.mxu0 0.0
    %101 = vmatpush1.msra.mxu0 0.0
    %102 = vmatprep.subr.mxu0 0.0
    %103 = vmatpush1.msra.mxu0 0.0
    %104 = vmatprep.subr.mxu0 0.0
    %105 = vmatpush1.msra.mxu0 0.0
    %106 = vmatprep.subr.mxu0 0.0
    %107 = vmatpush1.msra.mxu0 0.0
    %108 = vmatprep.subr.mxu0 0.0
    %109 = vmatpush1.msra.mxu0 0.0
    %110 = vmatprep.subr.mxu0 0.0
    %111 = vmatpush1.msra.mxu0 0.0
    %112 = vmatprep.subr.mxu0 0.0
    %113 = vmatpush1.msra.mxu0 0.0
    %114 = vmatprep.subr.mxu0 0.0
    %115 = vmatpush1.msra.mxu0 0.0
    %116 = vmatprep.subr.mxu0 0.0
    %117 = vmatpush1.msra.mxu0 0.0
    %118 = vmatprep.subr.mxu0 0.0
    %119 = vmatpush1.msra.mxu0 0.0
    %120 = vmatprep.subr.mxu0 0.0
    %121 = vmatpush1.msra.mxu0 0.0
    %122 = vmatprep.subr.mxu0 0.0
    %123 = vmatpush1.msra.mxu0 0.0
    %124 = vmatprep.subr.mxu0 0.0
    %125 = vmatpush1.msra.mxu0 0.0
    %126 = vmatprep.subr.mxu0 0.0
    %127 = vmatpush1.msra.mxu0 0.0
    %128 = vmatprep.subr.mxu0 0.0
    %129 = vmatpush1.msra.mxu0 0.0
    %130 = vmatprep.subr.mxu0 0.0
    %131 = vmatpush1.msra.mxu0 0.0
    %132 = vmatprep.subr.mxu0 0.0
    %133 = vmatpush1.msra.mxu0 0.0
    %134 = vmatprep.subr.mxu0 0.0
    %135 = vmatpush1.msra.mxu0 0.0
    %136 = vmatprep.subr.mxu0 0.0
    %137 = vmatpush1.msra.mxu0 0.0
    %138 = vmatprep.subr.mxu0 0.0
    %139 = vmatpush1.msra.mxu0 0.0
    %140 = vmatprep.subr.mxu0 0.0
    %141 = vmatpush1.msra.mxu0 0.0
    %142 = vmatprep.subr.mxu0 0.0
    %143 = vmatpush1.msra.mxu0 0.0
    %144 = vmatprep.mubr.f32.mxu0 0.0
    %145 = vmatmul.mubr.f32.gmra.mrb[0].mxu0 %v42
    %v146 = vpop.f32.mrb[0].mxu0
    %v147 = vadd.f32 0.0, %v146
    %v148 = vpop.f32.mrb[0].mxu0
    %v149 = vadd.f32 0.0, %v148
    %150 = vmatprep.mubr.f32.mxu0 0.0
    %151 = vmatmul.mubr.f32.gmra.mrb[0].mxu0 %v45
    %v152 = vpop.f32.mrb[0].mxu0
    %v153 = vadd.f32 0.0, %v152
    %v154 = vpop.f32.mrb[0].mxu0
    %v155 = vadd.f32 0.0, %v154
    %156 = vmatprep.mubr.f32.mxu0 0.0
    %157 = vmatmul.mubr.f32.gmra.mrb[0].mxu0 %v48
    %v158 = vpop.f32.mrb[0].mxu0
    %v159 = vadd.f32 0.0, %v158
    %v160 = vpop.f32.mrb[0].mxu0
    %v161 = vadd.f32 0.0, %v160
    %162 = vmatprep.mubr.f32.mxu0 0.0
    %163 = vmatmul.mubr.f32.gmra.mrb[0].mxu0 %v51
    %v164 = vpop.f32.mrb[0].mxu0
    %v165 = vadd.f32 0.0, %v164
    %v166 = vpop.f32.mrb[0].mxu0
    %v167 = vadd.f32 0.0, %v166
    %168 = vmatprep.mubr.f32.mxu0 0.0
    %169 = vmatmul.mubr.f32.gmra.mrb[0].mxu0 %v54
    %v170 = vpop.f32.mrb[0].mxu0
    %v171 = vadd.f32 0.0, %v170
    %v172 = vpop.f32.mrb[0].mxu0
    %v173 = vadd.f32 0.0, %v172
    %174 = vmatprep.mubr.f32.mxu0 0.0
    %175 = vmatmul.mubr.f32.gmra.mrb[0].mxu0 %v57
    %v176 = vpop.f32.mrb[0].mxu0
    %v177 = vadd.f32 0.0, %v176
    %v178 = vpop.f32.mrb[0].mxu0
    %v179 = vadd.f32 0.0, %v178
    %180 = vmatprep.mubr.f32.mxu0 0.0
    %181 = vmatmul.mubr.f32.gmra.mrb[0].mxu0 %v60
    %v182 = vpop.f32.mrb[0].mxu0
    %v183 = vadd.f32 0.0, %v182
    %v184 = vpop.f32.mrb[0].mxu0
    %v185 = vadd.f32 0.0, %v184
    %186 = vmatprep.mubr.f32.mxu0 0.0
    %187 = vmatmul.mubr.f32.gmra.mrb[0].mxu0 %v63
    %v188 = vpop.f32.mrb[0].mxu0
    %v189 = vadd.f32 0.0, %v188
    %v190 = vpop.f32.mrb[0].mxu0
    %v191 = vadd.f32 0.0, %v190
    %192 = vmatprep.mubr.f32.mxu0 0.0
    %193 = vmatmul.mubr.f32.gmra.mrb[0].mxu0 %v66
    %v194 = vpop.f32.mrb[0].mxu0
    %v195 = vadd.f32 0.0, %v194
    %v196 = vpop.f32.mrb[0].mxu0
    %v197 = vadd.f32 0.0, %v196
    %198 = vmatprep.mubr.f32.mxu0 0.0
    %199 = vmatmul.mubr.f32.gmra.mrb[0].mxu0 %v69
    %v200 = vpop.f32.mrb[0].mxu0
    %v201 = vadd.f32 0.0, %v200
    %v202 = vpop.f32.mrb[0].mxu0
    %v203 = vadd.f32 0.0, %v202
    %204 = vmatprep.mubr.f32.mxu0 0.0
    %205 = vmatmul.mubr.f32.gmra.mrb[0].mxu0 %v72
    %v206 = vpop.f32.mrb[0].mxu0
    %v207 = vadd.f32 0.0, %v206
    %v208 = vpop.f32.mrb[0].mxu0
    %v209 = vadd.f32 0.0, %v208
    %210 = vmatprep.mubr.f32.mxu0 0.0
    %211 = vmatmul.mubr.f32.gmra.mrb[0].mxu0 %v75
    %v212 = vpop.f32.mrb[0].mxu0
    %v213 = vadd.f32 0.0, %v212
    %v214 = vpop.f32.mrb[0].mxu0
    %v215 = vadd.f32 0.0, %v214
    %216 = vmatprep.mubr.f32.mxu0 0.0
    %217 = vmatmul.mubr.f32.gmra.mrb[0].mxu0 %v78
    %v218 = vpop.f32.mrb[0].mxu0
    %v219 = vadd.f32 0.0, %v218
    %v220 = vpop.f32.mrb[0].mxu0
    %v221 = vadd.f32 0.0, %v220
    %222 = vdwg.mxu0
    %223 = vst [vmem:[#allocation2] sm:$0xff] %v147
    %224 = vst [vmem:[#allocation2 + $0x8] sm:$0xff] %v149
    %225 = vst [vmem:[#allocation2 + $0x10] sm:$0xff] %v153
    %226 = vst [vmem:[#allocation2 + $0x18] sm:$0xff] %v155
    %227 = vst [vmem:[#allocation2 + $0x20] sm:$0xff] %v159
    %228 = vst [vmem:[#allocation2 + $0x28] sm:$0xff] %v161
    %229 = vst [vmem:[#allocation2 + $0x30] sm:$0xff] %v165
    %230 = vst [vmem:[#allocation2 + $0x38] sm:$0xff] %v167
    %231 = vst [vmem:[#allocation2 + $0x40] sm:$0xff] %v171
    %232 = vst [vmem:[#allocation2 + $0x48] sm:$0xff] %v173
    %233 = vst [vmem:[#allocation2 + $0x50] sm:$0xff] %v177
    %234 = vst [vmem:[#allocation2 + $0x58] sm:$0xff] %v179
    %235 = vst [vmem:[#allocation2 + $0x60] sm:$0xff] %v183
    %236 = vst [vmem:[#allocation2 + $0x68] sm:$0xff] %v185
    %237 = vst [vmem:[#allocation2 + $0x70] sm:$0xff] %v189
    %238 = vst [vmem:[#allocation2 + $0x78] sm:$0xff] %v191
    %239 = vst [vmem:[#allocation2 + $0x80] sm:$0xff] %v195
    %240 = vst [vmem:[#allocation2 + $0x88] sm:$0xff] %v197
    %241 = vst [vmem:[#allocation2 + $0x90] sm:$0xff] %v201
    %242 = vst [vmem:[#allocation2 + $0x98] sm:$0xff] %v203
    %243 = vst [vmem:[#allocation2 + $0xa0] sm:$0xff] %v207
    %244 = vst [vmem:[#allocation2 + $0xa8] sm:$0xff] %v209
    %245 = vst [vmem:[#allocation2 + $0xb0] sm:$0xff] %v213
    %246 = vst [vmem:[#allocation2 + $0xb8] sm:$0xff] %v215
    %247 = vst [vmem:[#allocation2 + $0xc0] sm:$0xff] %v219
    %248 = vst [vmem:[#allocation2 + $0xc8] sm:$0xff] %v221
    %v249 = vld [vmem:[#allocation4 + $0x10] sm:$0xff]
    %v250 = vld [vmem:[#allocation4 + $0x18] sm:$0xff]
    %v251 = vld [vmem:[#allocation4 + $0x20] sm:$0xff]
    %v252 = vld [vmem:[#allocation4 + $0x28] sm:$0xff]
    %v253 = vld [vmem:[#allocation4 + $0x30] sm:$0xff]
    %v254 = vld [vmem:[#allocation4 + $0x38] sm:$0xff]
    %v255 = vld [vmem:[#allocation4 + $0x40] sm:$0xff]
    %v256 = vld [vmem:[#allocation4 + $0x48] sm:$0xff]
    %v257 = vld [vmem:[#allocation4 + $0x50] sm:$0xff]
    %v258 = vld [vmem:[#allocation4 + $0x58] sm:$0xff]
    %v259 = vld [vmem:[#allocation4 + $0x60] sm:$0xff]
    %v260 = vld [vmem:[#allocation4 + $0x68] sm:$0xff]
    %v261 = vld [vmem:[#allocation4 + $0x70] sm:$0xff]
    %v262 = vld [vmem:[#allocation4 + $0x78] sm:$0xff]
    %v263 = vld [vmem:[#allocation4 + $0x80] sm:$0xff]
    %v264 = vld [vmem:[#allocation4 + $0x88] sm:$0xff]
    %v265 = vld [vmem:[#allocation2] sm:$0xff]
    %v266 = vld [vmem:[#allocation2 + $0x8] sm:$0xff]
    %v267 = vxor.u32 %v265, 2147483648
    %v268 = vmul.f32 %v267, 1.442695
    %v269 = vpow.pop %v268
    %v270 = vadd.f32 %v269, 1.0
    %v271 = vrcp.pop %v270
    %v272 = vmul.f32 1.0, %v271
    %v273 = vxor.u32 %v266, 2147483648
    %v274 = vmul.f32 %v273, 1.442695
    %v275 = vpow.pop %v274
    %v276 = vadd.f32 %v275, 1.0
    %v277 = vrcp.pop %v276
    %v278 = vmul.f32 1.0, %v277
    %v279 = vtanh.pop %v266
    %v280 = vmul.f32 %v272, %v279
    %v281 = vtanh.pop %v280
    %283 = vrot.lane.b32.xlu0 %v281, 64
    %v284 = vpop.permute.xlu0 %283
    %v286 = vmul.f32 %v278, %v284
    %vm287 = vcmask 261120
    %v288 = vsel %vm287, %v286, 0.0
    %290 = vrot.lane.b32.xlu0 %v280, 64
    %v291 = vpop.permute.xlu0 %290
    %v293 = vsel %vm287, %v291, 0.0
    %v294 = vld [vmem:[#allocation2 + $0x10] sm:$0xff]
    %v295 = vld [vmem:[#allocation2 + $0x18] sm:$0xff]
    %vm296 = vcmask 523264
    %v298 = vsel %vm296, %v288, 0
    %300 = vmatprep.subr.mxu0 %v250
    %301 = vmatpush1.msra.mxu0 %v249
    %302 = vmatprep.subr.mxu0 %v252
    %303 = vmatpush1.msra.mxu0 %v251
    %304 = vmatprep.subr.mxu0 %v254
    %305 = vmatpush1.msra.mxu0 %v253
    %306 = vmatprep.subr.mxu0 %v256
    %307 = vmatpush1.msra.mxu0 %v255
    %308 = vmatprep.subr.mxu0 %v258
    %309 = vmatpush1.msra.mxu0 %v257
    %310 = vmatprep.subr.mxu0 %v260
    %311 = vmatpush1.msra.mxu0 %v259
    %312 = vmatprep.subr.mxu0 %v262
    %313 = vmatpush1.msra.mxu0 %v261
    %314 = vmatprep.subr.mxu0 %v264
    %315 = vmatpush1.msra.mxu0 %v263
    %316 = vmatprep.subr.mxu0 0.0
    %317 = vmatpush1.msra.mxu0 0.0
    %318 = vmatprep.subr.mxu0 0.0
    %319 = vmatpush1.msra.mxu0 0.0
    %320 = vmatprep.subr.mxu0 0.0
    %321 = vmatpush1.msra.mxu0 0.0
    %322 = vmatprep.subr.mxu0 0.0
    %323 = vmatpush1.msra.mxu0 0.0
    %324 = vmatprep.subr.mxu0 0.0
    %325 = vmatpush1.msra.mxu0 0.0
    %326 = vmatprep.subr.mxu0 0.0
    %327 = vmatpush1.msra.mxu0 0.0
    %328 = vmatprep.subr.mxu0 0.0
    %329 = vmatpush1.msra.mxu0 0.0
    %330 = vmatprep.subr.mxu0 0.0
    %331 = vmatpush1.msra.mxu0 0.0
    %332 = vmatprep.subr.mxu0 0.0
    %333 = vmatpush1.msra.mxu0 0.0
    %334 = vmatprep.subr.mxu0 0.0
    %335 = vmatpush1.msra.mxu0 0.0
    %336 = vmatprep.subr.mxu0 0.0
    %337 = vmatpush1.msra.mxu0 0.0
    %338 = vmatprep.subr.mxu0 0.0
    %339 = vmatpush1.msra.mxu0 0.0
    %340 = vmatprep.subr.mxu0 0.0
    %341 = vmatpush1.msra.mxu0 0.0
    %342 = vmatprep.subr.mxu0 0.0
    %343 = vmatpush1.msra.mxu0 0.0
    %344 = vmatprep.subr.mxu0 0.0
    %345 = vmatpush1.msra.mxu0 0.0
    %346 = vmatprep.subr.mxu0 0.0
    %347 = vmatpush1.msra.mxu0 0.0
    %348 = vmatprep.subr.mxu0 0.0
    %349 = vmatpush1.msra.mxu0 0.0
    %350 = vmatprep.subr.mxu0 0.0
    %351 = vmatpush1.msra.mxu0 0.0
    %352 = vmatprep.subr.mxu0 0.0
    %353 = vmatpush1.msra.mxu0 0.0
    %354 = vmatprep.subr.mxu0 0.0
    %355 = vmatpush1.msra.mxu0 0.0
    %356 = vmatprep.subr.mxu0 0.0
    %357 = vmatpush1.msra.mxu0 0.0
    %358 = vmatprep.subr.mxu0 0.0
    %359 = vmatpush1.msra.mxu0 0.0
    %360 = vmatprep.subr.mxu0 0.0
    %361 = vmatpush1.msra.mxu0 0.0
    %362 = vmatprep.subr.mxu0 0.0
    %363 = vmatpush1.msra.mxu0 0.0
    %364 = vmatprep.mubr.f32.mxu0 0.0
    %365 = vmatmul.mubr.f32.gmra.mrb[0].mxu0 %v298
    %v366 = vpop.f32.mrb[0].mxu0
    %v367 = vadd.f32 %v294, %v366
    %v368 = vpop.f32.mrb[0].mxu0
    %v369 = vadd.f32 %v295, %v368
    %370 = vdwg.mxu0
    %v371 = vxor.u32 %v367, 2147483648
    %v372 = vxor.u32 %v369, 2147483648
    %v373 = vmul.f32 %v371, 1.442695
    %v374 = vpow.pop %v373
    %v375 = vmul.f32 %v372, 1.442695
    %v376 = vpow.pop %v375
    %v377 = vadd.f32 %v374, 1.0
    %v378 = vadd.f32 %v376, 1.0
    %v379 = vrcp.pop %v377
    %v380 = vmul.f32 1.0, %v379
    %v381 = vrcp.pop %v378
    %v382 = vmul.f32 1.0, %v381
    %v383 = vtanh.pop %v369
    %v384 = vmul.f32 %v380, %v293
    %v385 = vmul.f32 %v380, %v383
    %387 = vrot.lane.b32.xlu0 %v385, 64
    %v388 = vpop.permute.xlu0 %387
    %v390 = vadd.f32 %v384, %v388
    %v391 = vtanh.pop %v390
    %v392 = vmul.f32 %v382, %v391
    %393 = vst.msk [vmem:[#allocation3] sm:$0xff] %vm296, %v392
    %v394 = vld [vmem:[#allocation2 + $0x20] sm:$0xff]
    %v395 = vld [vmem:[#allocation2 + $0x28] sm:$0xff]
    %v397 = vsel %vm296, %v392, 0
    %399 = vmatprep.subr.mxu0 %v250
    %400 = vmatpush1.msra.mxu0 %v249
    %401 = vmatprep.subr.mxu0 %v252
    %402 = vmatpush1.msra.mxu0 %v251
    %403 = vmatprep.subr.mxu0 %v254
    %404 = vmatpush1.msra.mxu0 %v253
    %405 = vmatprep.subr.mxu0 %v256
    %406 = vmatpush1.msra.mxu0 %v255
    %407 = vmatprep.subr.mxu0 %v258
    %408 = vmatpush1.msra.mxu0 %v257
    %409 = vmatprep.subr.mxu0 %v260
    %410 = vmatpush1.msra.mxu0 %v259
    %411 = vmatprep.subr.mxu0 %v262
    %412 = vmatpush1.msra.mxu0 %v261
    %413 = vmatprep.subr.mxu0 %v264
    %414 = vmatpush1.msra.mxu0 %v263
    %415 = vmatprep.subr.mxu0 0.0
    %416 = vmatpush1.msra.mxu0 0.0
    %417 = vmatprep.subr.mxu0 0.0
    %418 = vmatpush1.msra.mxu0 0.0
    %419 = vmatprep.subr.mxu0 0.0
    %420 = vmatpush1.msra.mxu0 0.0
    %421 = vmatprep.subr.mxu0 0.0
    %422 = vmatpush1.msra.mxu0 0.0
    %423 = vmatprep.subr.mxu0 0.0
    %424 = vmatpush1.msra.mxu0 0.0
    %425 = vmatprep.subr.mxu0 0.0
    %426 = vmatpush1.msra.mxu0 0.0
    %427 = vmatprep.subr.mxu0 0.0
    %428 = vmatpush1.msra.mxu0 0.0
    %429 = vmatprep.subr.mxu0 0.0
    %430 = vmatpush1.msra.mxu0 0.0
    %431 = vmatprep.subr.mxu0 0.0
    %432 = vmatpush1.msra.mxu0 0.0
    %433 = vmatprep.subr.mxu0 0.0
    %434 = vmatpush1.msra.mxu0 0.0
    %435 = vmatprep.subr.mxu0 0.0
    %436 = vmatpush1.msra.mxu0 0.0
    %437 = vmatprep.subr.mxu0 0.0
    %438 = vmatpush1.msra.mxu0 0.0
    %439 = vmatprep.subr.mxu0 0.0
    %440 = vmatpush1.msra.mxu0 0.0
    %441 = vmatprep.subr.mxu0 0.0
    %442 = vmatpush1.msra.mxu0 0.0
    %443 = vmatprep.subr.mxu0 0.0
    %444 = vmatpush1.msra.mxu0 0.0
    %445 = vmatprep.subr.mxu0 0.0
    %446 = vmatpush1.msra.mxu0 0.0
    %447 = vmatprep.subr.mxu0 0.0
    %448 = vmatpush1.msra.mxu0 0.0
    %449 = vmatprep.subr.mxu0 0.0
    %450 = vmatpush1.msra.mxu0 0.0
    %451 = vmatprep.subr.mxu0 0.0
    %452 = vmatpush1.msra.mxu0 0.0
    %453 = vmatprep.subr.mxu0 0.0
    %454 = vmatpush1.msra.mxu0 0.0
    %455 = vmatprep.subr.mxu0 0.0
    %456 = vmatpush1.msra.mxu0 0.0
    %457 = vmatprep.subr.mxu0 0.0
    %458 = vmatpush1.msra.mxu0 0.0
    %459 = vmatprep.subr.mxu0 0.0
    %460 = vmatpush1.msra.mxu0 0.0
    %461 = vmatprep.subr.mxu0 0.0
    %462 = vmatpush1.msra.mxu0 0.0
    %463 = vmatprep.mubr.f32.mxu0 0.0
    %464 = vmatmul.mubr.f32.gmra.mrb[0].mxu0 %v397
    %v465 = vpop.f32.mrb[0].mxu0
    %v466 = vadd.f32 %v394, %v465
    %v467 = vpop.f32.mrb[0].mxu0
    %v468 = vadd.f32 %v395, %v467
    %469 = vdwg.mxu0
    %v470 = vxor.u32 %v466, 2147483648
    %v471 = vxor.u32 %v468, 2147483648
    %v472 = vmul.f32 %v470, 1.442695
    %v473 = vpow.pop %v472
    %v474 = vmul.f32 %v471, 1.442695
    %v475 = vpow.pop %v474
    %v476 = vadd.f32 %v473, 1.0
    %v477 = vadd.f32 %v475, 1.0
    %v478 = vrcp.pop %v476
    %v479 = vmul.f32 1.0, %v478
    %v480 = vrcp.pop %v477
    %v481 = vmul.f32 1.0, %v480
    %v482 = vtanh.pop %v468
    %v483 = vmul.f32 %v479, %v390
    %v484 = vmul.f32 %v479, %v482
    %486 = vrot.lane.b32.xlu0 %v484, 64
    %v487 = vpop.permute.xlu0 %486
    %v489 = vadd.f32 %v483, %v487
    %v490 = vtanh.pop %v489
    %v491 = vmul.f32 %v481, %v490
    %492 = vst.msk [vmem:[#allocation3 + $0x8] sm:$0xff] %vm296, %v491
    %v493 = vld [vmem:[#allocation2 + $0x30] sm:$0xff]
    %v494 = vld [vmem:[#allocation2 + $0x38] sm:$0xff]
    %v496 = vsel %vm296, %v491, 0
    %498 = vmatprep.subr.mxu0 %v250
    %499 = vmatpush1.msra.mxu0 %v249
    %500 = vmatprep.subr.mxu0 %v252
    %501 = vmatpush1.msra.mxu0 %v251
    %502 = vmatprep.subr.mxu0 %v254
    %503 = vmatpush1.msra.mxu0 %v253
    %504 = vmatprep.subr.mxu0 %v256
    %505 = vmatpush1.msra.mxu0 %v255
    %506 = vmatprep.subr.mxu0 %v258
    %507 = vmatpush1.msra.mxu0 %v257
    %508 = vmatprep.subr.mxu0 %v260
    %509 = vmatpush1.msra.mxu0 %v259
    %510 = vmatprep.subr.mxu0 %v262
    %511 = vmatpush1.msra.mxu0 %v261
    %512 = vmatprep.subr.mxu0 %v264
    %513 = vmatpush1.msra.mxu0 %v263
    %514 = vmatprep.subr.mxu0 0.0
    %515 = vmatpush1.msra.mxu0 0.0
    %516 = vmatprep.subr.mxu0 0.0
    %517 = vmatpush1.msra.mxu0 0.0
    %518 = vmatprep.subr.mxu0 0.0
    %519 = vmatpush1.msra.mxu0 0.0
    %520 = vmatprep.subr.mxu0 0.0
    %521 = vmatpush1.msra.mxu0 0.0
    %522 = vmatprep.subr.mxu0 0.0
    %523 = vmatpush1.msra.mxu0 0.0
    %524 = vmatprep.subr.mxu0 0.0
    %525 = vmatpush1.msra.mxu0 0.0
    %526 = vmatprep.subr.mxu0 0.0
    %527 = vmatpush1.msra.mxu0 0.0
    %528 = vmatprep.subr.mxu0 0.0
    %529 = vmatpush1.msra.mxu0 0.0
    %530 = vmatprep.subr.mxu0 0.0
    %531 = vmatpush1.msra.mxu0 0.0
    %532 = vmatprep.subr.mxu0 0.0
    %533 = vmatpush1.msra.mxu0 0.0
    %534 = vmatprep.subr.mxu0 0.0
    %535 = vmatpush1.msra.mxu0 0.0
    %536 = vmatprep.subr.mxu0 0.0
    %537 = vmatpush1.msra.mxu0 0.0
    %538 = vmatprep.subr.mxu0 0.0
    %539 = vmatpush1.msra.mxu0 0.0
    %540 = vmatprep.subr.mxu0 0.0
    %541 = vmatpush1.msra.mxu0 0.0
    %542 = vmatprep.subr.mxu0 0.0
    %543 = vmatpush1.msra.mxu0 0.0
    %544 = vmatprep.subr.mxu0 0.0
    %545 = vmatpush1.msra.mxu0 0.0
    %546 = vmatprep.subr.mxu0 0.0
    %547 = vmatpush1.msra.mxu0 0.0
    %548 = vmatprep.subr.mxu0 0.0
    %549 = vmatpush1.msra.mxu0 0.0
    %550 = vmatprep.subr.mxu0 0.0
    %551 = vmatpush1.msra.mxu0 0.0
    %552 = vmatprep.subr.mxu0 0.0
    %553 = vmatpush1.msra.mxu0 0.0
    %554 = vmatprep.subr.mxu0 0.0
    %555 = vmatpush1.msra.mxu0 0.0
    %556 = vmatprep.subr.mxu0 0.0
    %557 = vmatpush1.msra.mxu0 0.0
    %558 = vmatprep.subr.mxu0 0.0
    %559 = vmatpush1.msra.mxu0 0.0
    %560 = vmatprep.subr.mxu0 0.0
    %561 = vmatpush1.msra.mxu0 0.0
    %562 = vmatprep.mubr.f32.mxu0 0.0
    %563 = vmatmul.mubr.f32.gmra.mrb[0].mxu0 %v496
    %v564 = vpop.f32.mrb[0].mxu0
    %v565 = vadd.f32 %v493, %v564
    %v566 = vpop.f32.mrb[0].mxu0
    %v567 = vadd.f32 %v494, %v566
    %568 = vdwg.mxu0
    %v569 = vxor.u32 %v565, 2147483648
    %v570 = vxor.u32 %v567, 2147483648
    %v571 = vmul.f32 %v569, 1.442695
    %v572 = vpow.pop %v571
    %v573 = vmul.f32 %v570, 1.442695
    %v574 = vpow.pop %v573
    %v575 = vadd.f32 %v572, 1.0
    %v576 = vadd.f32 %v574, 1.0
    %v577 = vrcp.pop %v575
    %v578 = vmul.f32 1.0, %v577
    %v579 = vrcp.pop %v576
    %v580 = vmul.f32 1.0, %v579
    %v581 = vtanh.pop %v567
    %v582 = vmul.f32 %v578, %v489
    %v583 = vmul.f32 %v578, %v581
    %585 = vrot.lane.b32.xlu0 %v583, 64
    %v586 = vpop.permute.xlu0 %585
    %v588 = vadd.f32 %v582, %v586
    %v589 = vtanh.pop %v588
    %v590 = vmul.f32 %v580, %v589
    %591 = vst.msk [vmem:[#allocation3 + $0x10] sm:$0xff] %vm296, %v590
    %v592 = vld [vmem:[#allocation2 + $0x40] sm:$0xff]
    %v593 = vld [vmem:[#allocation2 + $0x48] sm:$0xff]
    %v595 = vsel %vm296, %v590, 0
    %597 = vmatprep.subr.mxu0 %v250
    %598 = vmatpush1.msra.mxu0 %v249
    %599 = vmatprep.subr.mxu0 %v252
    %600 = vmatpush1.msra.mxu0 %v251
    %601 = vmatprep.subr.mxu0 %v254
    %602 = vmatpush1.msra.mxu0 %v253
    %603 = vmatprep.subr.mxu0 %v256
    %604 = vmatpush1.msra.mxu0 %v255
    %605 = vmatprep.subr.mxu0 %v258
    %606 = vmatpush1.msra.mxu0 %v257
    %607 = vmatprep.subr.mxu0 %v260
    %608 = vmatpush1.msra.mxu0 %v259
    %609 = vmatprep.subr.mxu0 %v262
    %610 = vmatpush1.msra.mxu0 %v261
    %611 = vmatprep.subr.mxu0 %v264
    %612 = vmatpush1.msra.mxu0 %v263
    %613 = vmatprep.subr.mxu0 0.0
    %614 = vmatpush1.msra.mxu0 0.0
    %615 = vmatprep.subr.mxu0 0.0
    %616 = vmatpush1.msra.mxu0 0.0
    %617 = vmatprep.subr.mxu0 0.0
    %618 = vmatpush1.msra.mxu0 0.0
    %619 = vmatprep.subr.mxu0 0.0
    %620 = vmatpush1.msra.mxu0 0.0
    %621 = vmatprep.subr.mxu0 0.0
    %622 = vmatpush1.msra.mxu0 0.0
    %623 = vmatprep.subr.mxu0 0.0
    %624 = vmatpush1.msra.mxu0 0.0
    %625 = vmatprep.subr.mxu0 0.0
    %626 = vmatpush1.msra.mxu0 0.0
    %627 = vmatprep.subr.mxu0 0.0
    %628 = vmatpush1.msra.mxu0 0.0
    %629 = vmatprep.subr.mxu0 0.0
    %630 = vmatpush1.msra.mxu0 0.0
    %631 = vmatprep.subr.mxu0 0.0
    %632 = vmatpush1.msra.mxu0 0.0
    %633 = vmatprep.subr.mxu0 0.0
    %634 = vmatpush1.msra.mxu0 0.0
    %635 = vmatprep.subr.mxu0 0.0
    %636 = vmatpush1.msra.mxu0 0.0
    %637 = vmatprep.subr.mxu0 0.0
    %638 = vmatpush1.msra.mxu0 0.0
    %639 = vmatprep.subr.mxu0 0.0
    %640 = vmatpush1.msra.mxu0 0.0
    %641 = vmatprep.subr.mxu0 0.0
    %642 = vmatpush1.msra.mxu0 0.0
    %643 = vmatprep.subr.mxu0 0.0
    %644 = vmatpush1.msra.mxu0 0.0
    %645 = vmatprep.subr.mxu0 0.0
    %646 = vmatpush1.msra.mxu0 0.0
    %647 = vmatprep.subr.mxu0 0.0
    %648 = vmatpush1.msra.mxu0 0.0
    %649 = vmatprep.subr.mxu0 0.0
    %650 = vmatpush1.msra.mxu0 0.0
    %651 = vmatprep.subr.mxu0 0.0
    %652 = vmatpush1.msra.mxu0 0.0
    %653 = vmatprep.subr.mxu0 0.0
    %654 = vmatpush1.msra.mxu0 0.0
    %655 = vmatprep.subr.mxu0 0.0
    %656 = vmatpush1.msra.mxu0 0.0
    %657 = vmatprep.subr.mxu0 0.0
    %658 = vmatpush1.msra.mxu0 0.0
    %659 = vmatprep.subr.mxu0 0.0
    %660 = vmatpush1.msra.mxu0 0.0
    %661 = vmatprep.mubr.f32.mxu0 0.0
    %662 = vmatmul.mubr.f32.gmra.mrb[0].mxu0 %v595
    %v663 = vpop.f32.mrb[0].mxu0
    %v664 = vadd.f32 %v592, %v663
    %v665 = vpop.f32.mrb[0].mxu0
    %v666 = vadd.f32 %v593, %v665
    %667 = vdwg.mxu0
    %v668 = vxor.u32 %v664, 2147483648
    %v669 = vxor.u32 %v666, 2147483648
    %v670 = vmul.f32 %v668, 1.442695
    %v671 = vpow.pop %v670
    %v672 = vmul.f32 %v669, 1.442695
    %v673 = vpow.pop %v672
    %v674 = vadd.f32 %v671, 1.0
    %v675 = vadd.f32 %v673, 1.0
    %v676 = vrcp.pop %v674
    %v677 = vmul.f32 1.0, %v676
    %v678 = vrcp.pop %v675
    %v679 = vmul.f32 1.0, %v678
    %v680 = vtanh.pop %v666
    %v681 = vmul.f32 %v677, %v588
    %v682 = vmul.f32 %v677, %v680
    %684 = vrot.lane.b32.xlu0 %v682, 64
    %v685 = vpop.permute.xlu0 %684
    %v687 = vadd.f32 %v681, %v685
    %v688 = vtanh.pop %v687
    %v689 = vmul.f32 %v679, %v688
    %690 = vst.msk [vmem:[#allocation3 + $0x18] sm:$0xff] %vm296, %v689
    %v691 = vld [vmem:[#allocation2 + $0x50] sm:$0xff]
    %v692 = vld [vmem:[#allocation2 + $0x58] sm:$0xff]
    %v694 = vsel %vm296, %v689, 0
    %696 = vmatprep.subr.mxu0 %v250
    %697 = vmatpush1.msra.mxu0 %v249
    %698 = vmatprep.subr.mxu0 %v252
    %699 = vmatpush1.msra.mxu0 %v251
    %700 = vmatprep.subr.mxu0 %v254
    %701 = vmatpush1.msra.mxu0 %v253
    %702 = vmatprep.subr.mxu0 %v256
    %703 = vmatpush1.msra.mxu0 %v255
    %704 = vmatprep.subr.mxu0 %v258
    %705 = vmatpush1.msra.mxu0 %v257
    %706 = vmatprep.subr.mxu0 %v260
    %707 = vmatpush1.msra.mxu0 %v259
    %708 = vmatprep.subr.mxu0 %v262
    %709 = vmatpush1.msra.mxu0 %v261
    %710 = vmatprep.subr.mxu0 %v264
    %711 = vmatpush1.msra.mxu0 %v263
    %712 = vmatprep.subr.mxu0 0.0
    %713 = vmatpush1.msra.mxu0 0.0
    %714 = vmatprep.subr.mxu0 0.0
    %715 = vmatpush1.msra.mxu0 0.0
    %716 = vmatprep.subr.mxu0 0.0
    %717 = vmatpush1.msra.mxu0 0.0
    %718 = vmatprep.subr.mxu0 0.0
    %719 = vmatpush1.msra.mxu0 0.0
    %720 = vmatprep.subr.mxu0 0.0
    %721 = vmatpush1.msra.mxu0 0.0
    %722 = vmatprep.subr.mxu0 0.0
    %723 = vmatpush1.msra.mxu0 0.0
    %724 = vmatprep.subr.mxu0 0.0
    %725 = vmatpush1.msra.mxu0 0.0
    %726 = vmatprep.subr.mxu0 0.0
    %727 = vmatpush1.msra.mxu0 0.0
    %728 = vmatprep.subr.mxu0 0.0
    %729 = vmatpush1.msra.mxu0 0.0
    %730 = vmatprep.subr.mxu0 0.0
    %731 = vmatpush1.msra.mxu0 0.0
    %732 = vmatprep.subr.mxu0 0.0
    %733 = vmatpush1.msra.mxu0 0.0
    %734 = vmatprep.subr.mxu0 0.0
    %735 = vmatpush1.msra.mxu0 0.0
    %736 = vmatprep.subr.mxu0 0.0
    %737 = vmatpush1.msra.mxu0 0.0
    %738 = vmatprep.subr.mxu0 0.0
    %739 = vmatpush1.msra.mxu0 0.0
    %740 = vmatprep.subr.mxu0 0.0
    %741 = vmatpush1.msra.mxu0 0.0
    %742 = vmatprep.subr.mxu0 0.0
    %743 = vmatpush1.msra.mxu0 0.0
    %744 = vmatprep.subr.mxu0 0.0
    %745 = vmatpush1.msra.mxu0 0.0
    %746 = vmatprep.subr.mxu0 0.0
    %747 = vmatpush1.msra.mxu0 0.0
    %748 = vmatprep.subr.mxu0 0.0
    %749 = vmatpush1.msra.mxu0 0.0
    %750 = vmatprep.subr.mxu0 0.0
    %751 = vmatpush1.msra.mxu0 0.0
    %752 = vmatprep.subr.mxu0 0.0
    %753 = vmatpush1.msra.mxu0 0.0
    %754 = vmatprep.subr.mxu0 0.0
    %755 = vmatpush1.msra.mxu0 0.0
    %756 = vmatprep.subr.mxu0 0.0
    %757 = vmatpush1.msra.mxu0 0.0
    %758 = vmatprep.subr.mxu0 0.0
    %759 = vmatpush1.msra.mxu0 0.0
    %760 = vmatprep.mubr.f32.mxu0 0.0
    %761 = vmatmul.mubr.f32.gmra.mrb[0].mxu0 %v694
    %v762 = vpop.f32.mrb[0].mxu0
    %v763 = vadd.f32 %v691, %v762
    %v764 = vpop.f32.mrb[0].mxu0
    %v765 = vadd.f32 %v692, %v764
    %766 = vdwg.mxu0
    %v767 = vxor.u32 %v763, 2147483648
    %v768 = vxor.u32 %v765, 2147483648
    %v769 = vmul.f32 %v767, 1.442695
    %v770 = vpow.pop %v769
    %v771 = vmul.f32 %v768, 1.442695
    %v772 = vpow.pop %v771
    %v773 = vadd.f32 %v770, 1.0
    %v774 = vadd.f32 %v772, 1.0
    %v775 = vrcp.pop %v773
    %v776 = vmul.f32 1.0, %v775
    %v777 = vrcp.pop %v774
    %v778 = vmul.f32 1.0, %v777
    %v779 = vtanh.pop %v765
    %v780 = vmul.f32 %v776, %v687
    %v781 = vmul.f32 %v776, %v779
    %783 = vrot.lane.b32.xlu0 %v781, 64
    %v784 = vpop.permute.xlu0 %783
    %v786 = vadd.f32 %v780, %v784
    %v787 = vtanh.pop %v786
    %v788 = vmul.f32 %v778, %v787
    %789 = vst.msk [vmem:[#allocation3 + $0x20] sm:$0xff] %vm296, %v788
    %v790 = vld [vmem:[#allocation2 + $0x60] sm:$0xff]
    %v791 = vld [vmem:[#allocation2 + $0x68] sm:$0xff]
    %v793 = vsel %vm296, %v788, 0
    %795 = vmatprep.subr.mxu0 %v250
    %796 = vmatpush1.msra.mxu0 %v249
    %797 = vmatprep.subr.mxu0 %v252
    %798 = vmatpush1.msra.mxu0 %v251
    %799 = vmatprep.subr.mxu0 %v254
    %800 = vmatpush1.msra.mxu0 %v253
    %801 = vmatprep.subr.mxu0 %v256
    %802 = vmatpush1.msra.mxu0 %v255
    %803 = vmatprep.subr.mxu0 %v258
    %804 = vmatpush1.msra.mxu0 %v257
    %805 = vmatprep.subr.mxu0 %v260
    %806 = vmatpush1.msra.mxu0 %v259
    %807 = vmatprep.subr.mxu0 %v262
    %808 = vmatpush1.msra.mxu0 %v261
    %809 = vmatprep.subr.mxu0 %v264
    %810 = vmatpush1.msra.mxu0 %v263
    %811 = vmatprep.subr.mxu0 0.0
    %812 = vmatpush1.msra.mxu0 0.0
    %813 = vmatprep.subr.mxu0 0.0
    %814 = vmatpush1.msra.mxu0 0.0
    %815 = vmatprep.subr.mxu0 0.0
    %816 = vmatpush1.msra.mxu0 0.0
    %817 = vmatprep.subr.mxu0 0.0
    %818 = vmatpush1.msra.mxu0 0.0
    %819 = vmatprep.subr.mxu0 0.0
    %820 = vmatpush1.msra.mxu0 0.0
    %821 = vmatprep.subr.mxu0 0.0
    %822 = vmatpush1.msra.mxu0 0.0
    %823 = vmatprep.subr.mxu0 0.0
    %824 = vmatpush1.msra.mxu0 0.0
    %825 = vmatprep.subr.mxu0 0.0
    %826 = vmatpush1.msra.mxu0 0.0
    %827 = vmatprep.subr.mxu0 0.0
    %828 = vmatpush1.msra.mxu0 0.0
    %829 = vmatprep.subr.mxu0 0.0
    %830 = vmatpush1.msra.mxu0 0.0
    %831 = vmatprep.subr.mxu0 0.0
    %832 = vmatpush1.msra.mxu0 0.0
    %833 = vmatprep.subr.mxu0 0.0
    %834 = vmatpush1.msra.mxu0 0.0
    %835 = vmatprep.subr.mxu0 0.0
    %836 = vmatpush1.msra.mxu0 0.0
    %837 = vmatprep.subr.mxu0 0.0
    %838 = vmatpush1.msra.mxu0 0.0
    %839 = vmatprep.subr.mxu0 0.0
    %840 = vmatpush1.msra.mxu0 0.0
    %841 = vmatprep.subr.mxu0 0.0
    %842 = vmatpush1.msra.mxu0 0.0
    %843 = vmatprep.subr.mxu0 0.0
    %844 = vmatpush1.msra.mxu0 0.0
    %845 = vmatprep.subr.mxu0 0.0
    %846 = vmatpush1.msra.mxu0 0.0
    %847 = vmatprep.subr.mxu0 0.0
    %848 = vmatpush1.msra.mxu0 0.0
    %849 = vmatprep.subr.mxu0 0.0
    %850 = vmatpush1.msra.mxu0 0.0
    %851 = vmatprep.subr.mxu0 0.0
    %852 = vmatpush1.msra.mxu0 0.0
    %853 = vmatprep.subr.mxu0 0.0
    %854 = vmatpush1.msra.mxu0 0.0
    %855 = vmatprep.subr.mxu0 0.0
    %856 = vmatpush1.msra.mxu0 0.0
    %857 = vmatprep.subr.mxu0 0.0
    %858 = vmatpush1.msra.mxu0 0.0
    %859 = vmatprep.mubr.f32.mxu0 0.0
    %860 = vmatmul.mubr.f32.gmra.mrb[0].mxu0 %v793
    %v861 = vpop.f32.mrb[0].mxu0
    %v862 = vadd.f32 %v790, %v861
    %v863 = vpop.f32.mrb[0].mxu0
    %v864 = vadd.f32 %v791, %v863
    %865 = vdwg.mxu0
    %v866 = vxor.u32 %v862, 2147483648
    %v867 = vxor.u32 %v864, 2147483648
    %v868 = vmul.f32 %v866, 1.442695
    %v869 = vpow.pop %v868
    %v870 = vmul.f32 %v867, 1.442695
    %v871 = vpow.pop %v870
    %v872 = vadd.f32 %v869, 1.0
    %v873 = vadd.f32 %v871, 1.0
    %v874 = vrcp.pop %v872
    %v875 = vmul.f32 1.0, %v874
    %v876 = vrcp.pop %v873
    %v877 = vmul.f32 1.0, %v876
    %v878 = vtanh.pop %v864
    %v879 = vmul.f32 %v875, %v786
    %v880 = vmul.f32 %v875, %v878
    %882 = vrot.lane.b32.xlu0 %v880, 64
    %v883 = vpop.permute.xlu0 %882
    %v885 = vadd.f32 %v879, %v883
    %v886 = vtanh.pop %v885
    %v887 = vmul.f32 %v877, %v886
    %888 = vst.msk [vmem:[#allocation3 + $0x28] sm:$0xff] %vm296, %v887
    %v889 = vld [vmem:[#allocation2 + $0x70] sm:$0xff]
    %v890 = vld [vmem:[#allocation2 + $0x78] sm:$0xff]
    %v892 = vsel %vm296, %v887, 0
    %894 = vmatprep.subr.mxu0 %v250
    %895 = vmatpush1.msra.mxu0 %v249
    %896 = vmatprep.subr.mxu0 %v252
    %897 = vmatpush1.msra.mxu0 %v251
    %898 = vmatprep.subr.mxu0 %v254
    %899 = vmatpush1.msra.mxu0 %v253
    %900 = vmatprep.subr.mxu0 %v256
    %901 = vmatpush1.msra.mxu0 %v255
    %902 = vmatprep.subr.mxu0 %v258
    %903 = vmatpush1.msra.mxu0 %v257
    %904 = vmatprep.subr.mxu0 %v260
    %905 = vmatpush1.msra.mxu0 %v259
    %906 = vmatprep.subr.mxu0 %v262
    %907 = vmatpush1.msra.mxu0 %v261
    %908 = vmatprep.subr.mxu0 %v264
    %909 = vmatpush1.msra.mxu0 %v263
    %910 = vmatprep.subr.mxu0 0.0
    %911 = vmatpush1.msra.mxu0 0.0
    %912 = vmatprep.subr.mxu0 0.0
    %913 = vmatpush1.msra.mxu0 0.0
    %914 = vmatprep.subr.mxu0 0.0
    %915 = vmatpush1.msra.mxu0 0.0
    %916 = vmatprep.subr.mxu0 0.0
    %917 = vmatpush1.msra.mxu0 0.0
    %918 = vmatprep.subr.mxu0 0.0
    %919 = vmatpush1.msra.mxu0 0.0
    %920 = vmatprep.subr.mxu0 0.0
    %921 = vmatpush1.msra.mxu0 0.0
    %922 = vmatprep.subr.mxu0 0.0
    %923 = vmatpush1.msra.mxu0 0.0
    %924 = vmatprep.subr.mxu0 0.0
    %925 = vmatpush1.msra.mxu0 0.0
    %926 = vmatprep.subr.mxu0 0.0
    %927 = vmatpush1.msra.mxu0 0.0
    %928 = vmatprep.subr.mxu0 0.0
    %929 = vmatpush1.msra.mxu0 0.0
    %930 = vmatprep.subr.mxu0 0.0
    %931 = vmatpush1.msra.mxu0 0.0
    %932 = vmatprep.subr.mxu0 0.0
    %933 = vmatpush1.msra.mxu0 0.0
    %934 = vmatprep.subr.mxu0 0.0
    %935 = vmatpush1.msra.mxu0 0.0
    %936 = vmatprep.subr.mxu0 0.0
    %937 = vmatpush1.msra.mxu0 0.0
    %938 = vmatprep.subr.mxu0 0.0
    %939 = vmatpush1.msra.mxu0 0.0
    %940 = vmatprep.subr.mxu0 0.0
    %941 = vmatpush1.msra.mxu0 0.0
    %942 = vmatprep.subr.mxu0 0.0
    %943 = vmatpush1.msra.mxu0 0.0
    %944 = vmatprep.subr.mxu0 0.0
    %945 = vmatpush1.msra.mxu0 0.0
    %946 = vmatprep.subr.mxu0 0.0
    %947 = vmatpush1.msra.mxu0 0.0
    %948 = vmatprep.subr.mxu0 0.0
    %949 = vmatpush1.msra.mxu0 0.0
    %950 = vmatprep.subr.mxu0 0.0
    %951 = vmatpush1.msra.mxu0 0.0
    %952 = vmatprep.subr.mxu0 0.0
    %953 = vmatpush1.msra.mxu0 0.0
    %954 = vmatprep.subr.mxu0 0.0
    %955 = vmatpush1.msra.mxu0 0.0
    %956 = vmatprep.subr.mxu0 0.0
    %957 = vmatpush1.msra.mxu0 0.0
    %958 = vmatprep.mubr.f32.mxu0 0.0
    %959 = vmatmul.mubr.f32.gmra.mrb[0].mxu0 %v892
    %v960 = vpop.f32.mrb[0].mxu0
    %v961 = vadd.f32 %v889, %v960
    %v962 = vpop.f32.mrb[0].mxu0
    %v963 = vadd.f32 %v890, %v962
    %964 = vdwg.mxu0
    %v965 = vxor.u32 %v961, 2147483648
    %v966 = vxor.u32 %v963, 2147483648
    %v967 = vmul.f32 %v965, 1.442695
    %v968 = vpow.pop %v967
    %v969 = vmul.f32 %v966, 1.442695
    %v970 = vpow.pop %v969
    %v971 = vadd.f32 %v968, 1.0
    %v972 = vadd.f32 %v970, 1.0
    %v973 = vrcp.pop %v971
    %v974 = vmul.f32 1.0, %v973
    %v975 = vrcp.pop %v972
    %v976 = vmul.f32 1.0, %v975
    %v977 = vtanh.pop %v963
    %v978 = vmul.f32 %v974, %v885
    %v979 = vmul.f32 %v974, %v977
    %981 = vrot.lane.b32.xlu0 %v979, 64
    %v982 = vpop.permute.xlu0 %981
    %v984 = vadd.f32 %v978, %v982
    %v985 = vtanh.pop %v984
    %v986 = vmul.f32 %v976, %v985
    %987 = vst.msk [vmem:[#allocation3 + $0x30] sm:$0xff] %vm296, %v986
    %v988 = vld [vmem:[#allocation2 + $0x80] sm:$0xff]
    %v989 = vld [vmem:[#allocation2 + $0x88] sm:$0xff]
    %v991 = vsel %vm296, %v986, 0
    %993 = vmatprep.subr.mxu0 %v250
    %994 = vmatpush1.msra.mxu0 %v249
    %995 = vmatprep.subr.mxu0 %v252
    %996 = vmatpush1.msra.mxu0 %v251
    %997 = vmatprep.subr.mxu0 %v254
    %998 = vmatpush1.msra.mxu0 %v253
    %999 = vmatprep.subr.mxu0 %v256
    %1000 = vmatpush1.msra.mxu0 %v255
    %1001 = vmatprep.subr.mxu0 %v258
    %1002 = vmatpush1.msra.mxu0 %v257
    %1003 = vmatprep.subr.mxu0 %v260
    %1004 = vmatpush1.msra.mxu0 %v259
    %1005 = vmatprep.subr.mxu0 %v262
    %1006 = vmatpush1.msra.mxu0 %v261
    %1007 = vmatprep.subr.mxu0 %v264
    %1008 = vmatpush1.msra.mxu0 %v263
    %1009 = vmatprep.subr.mxu0 0.0
    %1010 = vmatpush1.msra.mxu0 0.0
    %1011 = vmatprep.subr.mxu0 0.0
    %1012 = vmatpush1.msra.mxu0 0.0
    %1013 = vmatprep.subr.mxu0 0.0
    %1014 = vmatpush1.msra.mxu0 0.0
    %1015 = vmatprep.subr.mxu0 0.0
    %1016 = vmatpush1.msra.mxu0 0.0
    %1017 = vmatprep.subr.mxu0 0.0
    %1018 = vmatpush1.msra.mxu0 0.0
    %1019 = vmatprep.subr.mxu0 0.0
    %1020 = vmatpush1.msra.mxu0 0.0
    %1021 = vmatprep.subr.mxu0 0.0
    %1022 = vmatpush1.msra.mxu0 0.0
    %1023 = vmatprep.subr.mxu0 0.0
    %1024 = vmatpush1.msra.mxu0 0.0
    %1025 = vmatprep.subr.mxu0 0.0
    %1026 = vmatpush1.msra.mxu0 0.0
    %1027 = vmatprep.subr.mxu0 0.0
    %1028 = vmatpush1.msra.mxu0 0.0
    %1029 = vmatprep.subr.mxu0 0.0
    %1030 = vmatpush1.msra.mxu0 0.0
    %1031 = vmatprep.subr.mxu0 0.0
    %1032 = vmatpush1.msra.mxu0 0.0
    %1033 = vmatprep.subr.mxu0 0.0
    %1034 = vmatpush1.msra.mxu0 0.0
    %1035 = vmatprep.subr.mxu0 0.0
    %1036 = vmatpush1.msra.mxu0 0.0
    %1037 = vmatprep.subr.mxu0 0.0
    %1038 = vmatpush1.msra.mxu0 0.0
    %1039 = vmatprep.subr.mxu0 0.0
    %1040 = vmatpush1.msra.mxu0 0.0
    %1041 = vmatprep.subr.mxu0 0.0
    %1042 = vmatpush1.msra.mxu0 0.0
    %1043 = vmatprep.subr.mxu0 0.0
    %1044 = vmatpush1.msra.mxu0 0.0
    %1045 = vmatprep.subr.mxu0 0.0
    %1046 = vmatpush1.msra.mxu0 0.0
    %1047 = vmatprep.subr.mxu0 0.0
    %1048 = vmatpush1.msra.mxu0 0.0
    %1049 = vmatprep.subr.mxu0 0.0
    %1050 = vmatpush1.msra.mxu0 0.0
    %1051 = vmatprep.subr.mxu0 0.0
    %1052 = vmatpush1.msra.mxu0 0.0
    %1053 = vmatprep.subr.mxu0 0.0
    %1054 = vmatpush1.msra.mxu0 0.0
    %1055 = vmatprep.subr.mxu0 0.0
    %1056 = vmatpush1.msra.mxu0 0.0
    %1057 = vmatprep.mubr.f32.mxu0 0.0
    %1058 = vmatmul.mubr.f32.gmra.mrb[0].mxu0 %v991
    %v1059 = vpop.f32.mrb[0].mxu0
    %v1060 = vadd.f32 %v988, %v1059
    %v1061 = vpop.f32.mrb[0].mxu0
    %v1062 = vadd.f32 %v989, %v1061
    %1063 = vdwg.mxu0
    %v1064 = vxor.u32 %v1060, 2147483648
    %v1065 = vxor.u32 %v1062, 2147483648
    %v1066 = vmul.f32 %v1064, 1.442695
    %v1067 = vpow.pop %v1066
    %v1068 = vmul.f32 %v1065, 1.442695
    %v1069 = vpow.pop %v1068
    %v1070 = vadd.f32 %v1067, 1.0
    %v1071 = vadd.f32 %v1069, 1.0
    %v1072 = vrcp.pop %v1070
    %v1073 = vmul.f32 1.0, %v1072
    %v1074 = vrcp.pop %v1071
    %v1075 = vmul.f32 1.0, %v1074
    %v1076 = vtanh.pop %v1062
    %v1077 = vmul.f32 %v1073, %v984
    %v1078 = vmul.f32 %v1073, %v1076
    %1080 = vrot.lane.b32.xlu0 %v1078, 64
    %v1081 = vpop.permute.xlu0 %1080
    %v1083 = vadd.f32 %v1077, %v1081
    %v1084 = vtanh.pop %v1083
    %v1085 = vmul.f32 %v1075, %v1084
    %1086 = vst.msk [vmem:[#allocation3 + $0x38] sm:$0xff] %vm296, %v1085
    %v1087 = vld [vmem:[#allocation2 + $0x90] sm:$0xff]
    %v1088 = vld [vmem:[#allocation2 + $0x98] sm:$0xff]
    %v1090 = vsel %vm296, %v1085, 0
    %1092 = vmatprep.subr.mxu0 %v250
    %1093 = vmatpush1.msra.mxu0 %v249
    %1094 = vmatprep.subr.mxu0 %v252
    %1095 = vmatpush1.msra.mxu0 %v251
    %1096 = vmatprep.subr.mxu0 %v254
    %1097 = vmatpush1.msra.mxu0 %v253
    %1098 = vmatprep.subr.mxu0 %v256
    %1099 = vmatpush1.msra.mxu0 %v255
    %1100 = vmatprep.subr.mxu0 %v258
    %1101 = vmatpush1.msra.mxu0 %v257
    %1102 = vmatprep.subr.mxu0 %v260
    %1103 = vmatpush1.msra.mxu0 %v259
    %1104 = vmatprep.subr.mxu0 %v262
    %1105 = vmatpush1.msra.mxu0 %v261
    %1106 = vmatprep.subr.mxu0 %v264
    %1107 = vmatpush1.msra.mxu0 %v263
    %1108 = vmatprep.subr.mxu0 0.0
    %1109 = vmatpush1.msra.mxu0 0.0
    %1110 = vmatprep.subr.mxu0 0.0
    %1111 = vmatpush1.msra.mxu0 0.0
    %1112 = vmatprep.subr.mxu0 0.0
    %1113 = vmatpush1.msra.mxu0 0.0
    %1114 = vmatprep.subr.mxu0 0.0
    %1115 = vmatpush1.msra.mxu0 0.0
    %1116 = vmatprep.subr.mxu0 0.0
    %1117 = vmatpush1.msra.mxu0 0.0
    %1118 = vmatprep.subr.mxu0 0.0
    %1119 = vmatpush1.msra.mxu0 0.0
    %1120 = vmatprep.subr.mxu0 0.0
    %1121 = vmatpush1.msra.mxu0 0.0
    %1122 = vmatprep.subr.mxu0 0.0
    %1123 = vmatpush1.msra.mxu0 0.0
    %1124 = vmatprep.subr.mxu0 0.0
    %1125 = vmatpush1.msra.mxu0 0.0
    %1126 = vmatprep.subr.mxu0 0.0
    %1127 = vmatpush1.msra.mxu0 0.0
    %1128 = vmatprep.subr.mxu0 0.0
    %1129 = vmatpush1.msra.mxu0 0.0
    %1130 = vmatprep.subr.mxu0 0.0
    %1131 = vmatpush1.msra.mxu0 0.0
    %1132 = vmatprep.subr.mxu0 0.0
    %1133 = vmatpush1.msra.mxu0 0.0
    %1134 = vmatprep.subr.mxu0 0.0
    %1135 = vmatpush1.msra.mxu0 0.0
    %1136 = vmatprep.subr.mxu0 0.0
    %1137 = vmatpush1.msra.mxu0 0.0
    %1138 = vmatprep.subr.mxu0 0.0
    %1139 = vmatpush1.msra.mxu0 0.0
    %1140 = vmatprep.subr.mxu0 0.0
    %1141 = vmatpush1.msra.mxu0 0.0
    %1142 = vmatprep.subr.mxu0 0.0
    %1143 = vmatpush1.msra.mxu0 0.0
    %1144 = vmatprep.subr.mxu0 0.0
    %1145 = vmatpush1.msra.mxu0 0.0
    %1146 = vmatprep.subr.mxu0 0.0
    %1147 = vmatpush1.msra.mxu0 0.0
    %1148 = vmatprep.subr.mxu0 0.0
    %1149 = vmatpush1.msra.mxu0 0.0
    %1150 = vmatprep.subr.mxu0 0.0
    %1151 = vmatpush1.msra.mxu0 0.0
    %1152 = vmatprep.subr.mxu0 0.0
    %1153 = vmatpush1.msra.mxu0 0.0
    %1154 = vmatprep.subr.mxu0 0.0
    %1155 = vmatpush1.msra.mxu0 0.0
    %1156 = vmatprep.mubr.f32.mxu0 0.0
    %1157 = vmatmul.mubr.f32.gmra.mrb[0].mxu0 %v1090
    %v1158 = vpop.f32.mrb[0].mxu0
    %v1159 = vadd.f32 %v1087, %v1158
    %v1160 = vpop.f32.mrb[0].mxu0
    %v1161 = vadd.f32 %v1088, %v1160
    %1162 = vdwg.mxu0
    %v1163 = vxor.u32 %v1159, 2147483648
    %v1164 = vxor.u32 %v1161, 2147483648
    %v1165 = vmul.f32 %v1163, 1.442695
    %v1166 = vpow.pop %v1165
    %v1167 = vmul.f32 %v1164, 1.442695
    %v1168 = vpow.pop %v1167
    %v1169 = vadd.f32 %v1166, 1.0
    %v1170 = vadd.f32 %v1168, 1.0
    %v1171 = vrcp.pop %v1169
    %v1172 = vmul.f32 1.0, %v1171
    %v1173 = vrcp.pop %v1170
    %v1174 = vmul.f32 1.0, %v1173
    %v1175 = vtanh.pop %v1161
    %v1176 = vmul.f32 %v1172, %v1083
    %v1177 = vmul.f32 %v1172, %v1175
    %1179 = vrot.lane.b32.xlu0 %v1177, 64
    %v1180 = vpop.permute.xlu0 %1179
    %v1182 = vadd.f32 %v1176, %v1180
    %v1183 = vtanh.pop %v1182
    %v1184 = vmul.f32 %v1174, %v1183
    %1185 = vst.msk [vmem:[#allocation3 + $0x40] sm:$0xff] %vm296, %v1184
    %v1186 = vld [vmem:[#allocation2 + $0xa0] sm:$0xff]
    %v1187 = vld [vmem:[#allocation2 + $0xa8] sm:$0xff]
    %v1189 = vsel %vm296, %v1184, 0
    %1191 = vmatprep.subr.mxu0 %v250
    %1192 = vmatpush1.msra.mxu0 %v249
    %1193 = vmatprep.subr.mxu0 %v252
    %1194 = vmatpush1.msra.mxu0 %v251
    %1195 = vmatprep.subr.mxu0 %v254
    %1196 = vmatpush1.msra.mxu0 %v253
    %1197 = vmatprep.subr.mxu0 %v256
    %1198 = vmatpush1.msra.mxu0 %v255
    %1199 = vmatprep.subr.mxu0 %v258
    %1200 = vmatpush1.msra.mxu0 %v257
    %1201 = vmatprep.subr.mxu0 %v260
    %1202 = vmatpush1.msra.mxu0 %v259
    %1203 = vmatprep.subr.mxu0 %v262
    %1204 = vmatpush1.msra.mxu0 %v261
    %1205 = vmatprep.subr.mxu0 %v264
    %1206 = vmatpush1.msra.mxu0 %v263
    %1207 = vmatprep.subr.mxu0 0.0
    %1208 = vmatpush1.msra.mxu0 0.0
    %1209 = vmatprep.subr.mxu0 0.0
    %1210 = vmatpush1.msra.mxu0 0.0
    %1211 = vmatprep.subr.mxu0 0.0
    %1212 = vmatpush1.msra.mxu0 0.0
    %1213 = vmatprep.subr.mxu0 0.0
    %1214 = vmatpush1.msra.mxu0 0.0
    %1215 = vmatprep.subr.mxu0 0.0
    %1216 = vmatpush1.msra.mxu0 0.0
    %1217 = vmatprep.subr.mxu0 0.0
    %1218 = vmatpush1.msra.mxu0 0.0
    %1219 = vmatprep.subr.mxu0 0.0
    %1220 = vmatpush1.msra.mxu0 0.0
    %1221 = vmatprep.subr.mxu0 0.0
    %1222 = vmatpush1.msra.mxu0 0.0
    %1223 = vmatprep.subr.mxu0 0.0
    %1224 = vmatpush1.msra.mxu0 0.0
    %1225 = vmatprep.subr.mxu0 0.0
    %1226 = vmatpush1.msra.mxu0 0.0
    %1227 = vmatprep.subr.mxu0 0.0
    %1228 = vmatpush1.msra.mxu0 0.0
    %1229 = vmatprep.subr.mxu0 0.0
    %1230 = vmatpush1.msra.mxu0 0.0
    %1231 = vmatprep.subr.mxu0 0.0
    %1232 = vmatpush1.msra.mxu0 0.0
    %1233 = vmatprep.subr.mxu0 0.0
    %1234 = vmatpush1.msra.mxu0 0.0
    %1235 = vmatprep.subr.mxu0 0.0
    %1236 = vmatpush1.msra.mxu0 0.0
    %1237 = vmatprep.subr.mxu0 0.0
    %1238 = vmatpush1.msra.mxu0 0.0
    %1239 = vmatprep.subr.mxu0 0.0
    %1240 = vmatpush1.msra.mxu0 0.0
    %1241 = vmatprep.subr.mxu0 0.0
    %1242 = vmatpush1.msra.mxu0 0.0
    %1243 = vmatprep.subr.mxu0 0.0
    %1244 = vmatpush1.msra.mxu0 0.0
    %1245 = vmatprep.subr.mxu0 0.0
    %1246 = vmatpush1.msra.mxu0 0.0
    %1247 = vmatprep.subr.mxu0 0.0
    %1248 = vmatpush1.msra.mxu0 0.0
    %1249 = vmatprep.subr.mxu0 0.0
    %1250 = vmatpush1.msra.mxu0 0.0
    %1251 = vmatprep.subr.mxu0 0.0
    %1252 = vmatpush1.msra.mxu0 0.0
    %1253 = vmatprep.subr.mxu0 0.0
    %1254 = vmatpush1.msra.mxu0 0.0
    %1255 = vmatprep.mubr.f32.mxu0 0.0
    %1256 = vmatmul.mubr.f32.gmra.mrb[0].mxu0 %v1189
    %v1257 = vpop.f32.mrb[0].mxu0
    %v1258 = vadd.f32 %v1186, %v1257
    %v1259 = vpop.f32.mrb[0].mxu0
    %v1260 = vadd.f32 %v1187, %v1259
    %1261 = vdwg.mxu0
    %v1262 = vxor.u32 %v1258, 2147483648
    %v1263 = vxor.u32 %v1260, 2147483648
    %v1264 = vmul.f32 %v1262, 1.442695
    %v1265 = vpow.pop %v1264
    %v1266 = vmul.f32 %v1263, 1.442695
    %v1267 = vpow.pop %v1266
    %v1268 = vadd.f32 %v1265, 1.0
    %v1269 = vadd.f32 %v1267, 1.0
    %v1270 = vrcp.pop %v1268
    %v1271 = vmul.f32 1.0, %v1270
    %v1272 = vrcp.pop %v1269
    %v1273 = vmul.f32 1.0, %v1272
    %v1274 = vtanh.pop %v1260
    %v1275 = vmul.f32 %v1271, %v1182
    %v1276 = vmul.f32 %v1271, %v1274
    %1278 = vrot.lane.b32.xlu0 %v1276, 64
    %v1279 = vpop.permute.xlu0 %1278
    %v1281 = vadd.f32 %v1275, %v1279
    %v1282 = vtanh.pop %v1281
    %v1283 = vmul.f32 %v1273, %v1282
    %1284 = vst.msk [vmem:[#allocation3 + $0x48] sm:$0xff] %vm296, %v1283
    %v1285 = vld [vmem:[#allocation2 + $0xb0] sm:$0xff]
    %v1286 = vld [vmem:[#allocation2 + $0xb8] sm:$0xff]
    %v1288 = vsel %vm296, %v1283, 0
    %1290 = vmatprep.subr.mxu0 %v250
    %1291 = vmatpush1.msra.mxu0 %v249
    %1292 = vmatprep.subr.mxu0 %v252
    %1293 = vmatpush1.msra.mxu0 %v251
    %1294 = vmatprep.subr.mxu0 %v254
    %1295 = vmatpush1.msra.mxu0 %v253
    %1296 = vmatprep.subr.mxu0 %v256
    %1297 = vmatpush1.msra.mxu0 %v255
    %1298 = vmatprep.subr.mxu0 %v258
    %1299 = vmatpush1.msra.mxu0 %v257
    %1300 = vmatprep.subr.mxu0 %v260
    %1301 = vmatpush1.msra.mxu0 %v259
    %1302 = vmatprep.subr.mxu0 %v262
    %1303 = vmatpush1.msra.mxu0 %v261
    %1304 = vmatprep.subr.mxu0 %v264
    %1305 = vmatpush1.msra.mxu0 %v263
    %1306 = vmatprep.subr.mxu0 0.0
    %1307 = vmatpush1.msra.mxu0 0.0
    %1308 = vmatprep.subr.mxu0 0.0
    %1309 = vmatpush1.msra.mxu0 0.0
    %1310 = vmatprep.subr.mxu0 0.0
    %1311 = vmatpush1.msra.mxu0 0.0
    %1312 = vmatprep.subr.mxu0 0.0
    %1313 = vmatpush1.msra.mxu0 0.0
    %1314 = vmatprep.subr.mxu0 0.0
    %1315 = vmatpush1.msra.mxu0 0.0
    %1316 = vmatprep.subr.mxu0 0.0
    %1317 = vmatpush1.msra.mxu0 0.0
    %1318 = vmatprep.subr.mxu0 0.0
    %1319 = vmatpush1.msra.mxu0 0.0
    %1320 = vmatprep.subr.mxu0 0.0
    %1321 = vmatpush1.msra.mxu0 0.0
    %1322 = vmatprep.subr.mxu0 0.0
    %1323 = vmatpush1.msra.mxu0 0.0
    %1324 = vmatprep.subr.mxu0 0.0
    %1325 = vmatpush1.msra.mxu0 0.0
    %1326 = vmatprep.subr.mxu0 0.0
    %1327 = vmatpush1.msra.mxu0 0.0
    %1328 = vmatprep.subr.mxu0 0.0
    %1329 = vmatpush1.msra.mxu0 0.0
    %1330 = vmatprep.subr.mxu0 0.0
    %1331 = vmatpush1.msra.mxu0 0.0
    %1332 = vmatprep.subr.mxu0 0.0
    %1333 = vmatpush1.msra.mxu0 0.0
    %1334 = vmatprep.subr.mxu0 0.0
    %1335 = vmatpush1.msra.mxu0 0.0
    %1336 = vmatprep.subr.mxu0 0.0
    %1337 = vmatpush1.msra.mxu0 0.0
    %1338 = vmatprep.subr.mxu0 0.0
    %1339 = vmatpush1.msra.mxu0 0.0
    %1340 = vmatprep.subr.mxu0 0.0
    %1341 = vmatpush1.msra.mxu0 0.0
    %1342 = vmatprep.subr.mxu0 0.0
    %1343 = vmatpush1.msra.mxu0 0.0
    %1344 = vmatprep.subr.mxu0 0.0
    %1345 = vmatpush1.msra.mxu0 0.0
    %1346 = vmatprep.subr.mxu0 0.0
    %1347 = vmatpush1.msra.mxu0 0.0
    %1348 = vmatprep.subr.mxu0 0.0
    %1349 = vmatpush1.msra.mxu0 0.0
    %1350 = vmatprep.subr.mxu0 0.0
    %1351 = vmatpush1.msra.mxu0 0.0
    %1352 = vmatprep.subr.mxu0 0.0
    %1353 = vmatpush1.msra.mxu0 0.0
    %1354 = vmatprep.mubr.f32.mxu0 0.0
    %1355 = vmatmul.mubr.f32.gmra.mrb[0].mxu0 %v1288
    %v1356 = vpop.f32.mrb[0].mxu0
    %v1357 = vadd.f32 %v1285, %v1356
    %v1358 = vpop.f32.mrb[0].mxu0
    %v1359 = vadd.f32 %v1286, %v1358
    %1360 = vdwg.mxu0
    %v1361 = vxor.u32 %v1357, 2147483648
    %v1362 = vxor.u32 %v1359, 2147483648
    %v1363 = vmul.f32 %v1361, 1.442695
    %v1364 = vpow.pop %v1363
    %v1365 = vmul.f32 %v1362, 1.442695
    %v1366 = vpow.pop %v1365
    %v1367 = vadd.f32 %v1364, 1.0
    %v1368 = vadd.f32 %v1366, 1.0
    %v1369 = vrcp.pop %v1367
    %v1370 = vmul.f32 1.0, %v1369
    %v1371 = vrcp.pop %v1368
    %v1372 = vmul.f32 1.0, %v1371
    %v1373 = vtanh.pop %v1359
    %v1374 = vmul.f32 %v1370, %v1281
    %v1375 = vmul.f32 %v1370, %v1373
    %1377 = vrot.lane.b32.xlu0 %v1375, 64
    %v1378 = vpop.permute.xlu0 %1377
    %v1380 = vadd.f32 %v1374, %v1378
    %v1381 = vtanh.pop %v1380
    %v1382 = vmul.f32 %v1372, %v1381
    %1383 = vst.msk [vmem:[#allocation3 + $0x50] sm:$0xff] %vm296, %v1382
    %v1384 = vld [vmem:[#allocation2 + $0xc0] sm:$0xff]
    %v1385 = vld [vmem:[#allocation2 + $0xc8] sm:$0xff]
    %v1387 = vsel %vm296, %v1382, 0
    %1389 = vmatprep.subr.mxu0 %v250
    %1390 = vmatpush1.msra.mxu0 %v249
    %1391 = vmatprep.subr.mxu0 %v252
    %1392 = vmatpush1.msra.mxu0 %v251
    %1393 = vmatprep.subr.mxu0 %v254
    %1394 = vmatpush1.msra.mxu0 %v253
    %1395 = vmatprep.subr.mxu0 %v256
    %1396 = vmatpush1.msra.mxu0 %v255
    %1397 = vmatprep.subr.mxu0 %v258
    %1398 = vmatpush1.msra.mxu0 %v257
    %1399 = vmatprep.subr.mxu0 %v260
    %1400 = vmatpush1.msra.mxu0 %v259
    %1401 = vmatprep.subr.mxu0 %v262
    %1402 = vmatpush1.msra.mxu0 %v261
    %1403 = vmatprep.subr.mxu0 %v264
    %1404 = vmatpush1.msra.mxu0 %v263
    %1405 = vmatprep.subr.mxu0 0.0
    %1406 = vmatpush1.msra.mxu0 0.0
    %1407 = vmatprep.subr.mxu0 0.0
    %1408 = vmatpush1.msra.mxu0 0.0
    %1409 = vmatprep.subr.mxu0 0.0
    %1410 = vmatpush1.msra.mxu0 0.0
    %1411 = vmatprep.subr.mxu0 0.0
    %1412 = vmatpush1.msra.mxu0 0.0
    %1413 = vmatprep.subr.mxu0 0.0
    %1414 = vmatpush1.msra.mxu0 0.0
    %1415 = vmatprep.subr.mxu0 0.0
    %1416 = vmatpush1.msra.mxu0 0.0
    %1417 = vmatprep.subr.mxu0 0.0
    %1418 = vmatpush1.msra.mxu0 0.0
    %1419 = vmatprep.subr.mxu0 0.0
    %1420 = vmatpush1.msra.mxu0 0.0
    %1421 = vmatprep.subr.mxu0 0.0
    %1422 = vmatpush1.msra.mxu0 0.0
    %1423 = vmatprep.subr.mxu0 0.0
    %1424 = vmatpush1.msra.mxu0 0.0
    %1425 = vmatprep.subr.mxu0 0.0
    %1426 = vmatpush1.msra.mxu0 0.0
    %1427 = vmatprep.subr.mxu0 0.0
    %1428 = vmatpush1.msra.mxu0 0.0
    %1429 = vmatprep.subr.mxu0 0.0
    %1430 = vmatpush1.msra.mxu0 0.0
    %1431 = vmatprep.subr.mxu0 0.0
    %1432 = vmatpush1.msra.mxu0 0.0
    %1433 = vmatprep.subr.mxu0 0.0
    %1434 = vmatpush1.msra.mxu0 0.0
    %1435 = vmatprep.subr.mxu0 0.0
    %1436 = vmatpush1.msra.mxu0 0.0
    %1437 = vmatprep.subr.mxu0 0.0
    %1438 = vmatpush1.msra.mxu0 0.0
    %1439 = vmatprep.subr.mxu0 0.0
    %1440 = vmatpush1.msra.mxu0 0.0
    %1441 = vmatprep.subr.mxu0 0.0
    %1442 = vmatpush1.msra.mxu0 0.0
    %1443 = vmatprep.subr.mxu0 0.0
    %1444 = vmatpush1.msra.mxu0 0.0
    %1445 = vmatprep.subr.mxu0 0.0
    %1446 = vmatpush1.msra.mxu0 0.0
    %1447 = vmatprep.subr.mxu0 0.0
    %1448 = vmatpush1.msra.mxu0 0.0
    %1449 = vmatprep.subr.mxu0 0.0
    %1450 = vmatpush1.msra.mxu0 0.0
    %1451 = vmatprep.subr.mxu0 0.0
    %1452 = vmatpush1.msra.mxu0 0.0
    %1453 = vmatprep.mubr.f32.mxu0 0.0
    %1454 = vmatmul.mubr.f32.gmra.mrb[0].mxu0 %v1387
    %v1455 = vpop.f32.mrb[0].mxu0
    %v1456 = vadd.f32 %v1384, %v1455
    %v1457 = vpop.f32.mrb[0].mxu0
    %v1458 = vadd.f32 %v1385, %v1457
    %1459 = vdwg.mxu0
    %v1460 = vxor.u32 %v1456, 2147483648
    %v1461 = vxor.u32 %v1458, 2147483648
    %v1462 = vmul.f32 %v1460, 1.442695
    %v1463 = vpow.pop %v1462
    %v1464 = vmul.f32 %v1461, 1.442695
    %v1465 = vpow.pop %v1464
    %v1466 = vadd.f32 %v1463, 1.0
    %v1467 = vadd.f32 %v1465, 1.0
    %v1468 = vrcp.pop %v1466
    %v1469 = vmul.f32 1.0, %v1468
    %v1470 = vrcp.pop %v1467
    %v1471 = vmul.f32 1.0, %v1470
    %v1472 = vtanh.pop %v1458
    %v1473 = vmul.f32 %v1469, %v1380
    %v1474 = vmul.f32 %v1469, %v1472
    %1476 = vrot.lane.b32.xlu0 %v1474, 64
    %v1477 = vpop.permute.xlu0 %1476
    %v1479 = vadd.f32 %v1473, %v1477
    %v1480 = vtanh.pop %v1479
    %v1481 = vmul.f32 %v1471, %v1480
    %1482 = vst.msk [vmem:[#allocation3 + $0x58] sm:$0xff] %vm296, %v1481
    %v1483 = vld [vmem:[#allocation4 + $0x90] sm:$0xff]
    %v1484 = vld [vmem:[#allocation4 + $0xa0] sm:$0xff]
    %v1485 = vld [vmem:[#allocation4 + $0xb0] sm:$0xff]
    %v1486 = vld [vmem:[#allocation4 + $0xc0] sm:$0xff]
    %v1487 = vld [vmem:[#allocation4 + $0xd0] sm:$0xff]
    %v1488 = vld [vmem:[#allocation4 + $0xe0] sm:$0xff]
    %v1489 = vld [vmem:[#allocation4 + $0xf0] sm:$0xff]
    %v1490 = vld [vmem:[#allocation4 + $0x100] sm:$0xff]
    %v1491 = vld [vmem:[#allocation4 + $0x110] ss:$0 sm:$0xff]
    %v1492 = vld [vmem:[#allocation3] sm:$0xff]
    %v1493 = vld [vmem:[#allocation3 + $0x8] sm:$0xff]
    %v1494 = vld [vmem:[#allocation3 + $0x10] sm:$0xff]
    %v1495 = vld [vmem:[#allocation3 + $0x18] sm:$0xff]
    %v1496 = vld [vmem:[#allocation3 + $0x20] sm:$0xff]
    %v1497 = vld [vmem:[#allocation3 + $0x28] sm:$0xff]
    %v1498 = vld [vmem:[#allocation3 + $0x30] sm:$0xff]
    %v1499 = vld [vmem:[#allocation3 + $0x38] sm:$0xff]
    %v1500 = vld [vmem:[#allocation3 + $0x40] sm:$0xff]
    %v1501 = vld [vmem:[#allocation3 + $0x48] sm:$0xff]
    %v1502 = vld [vmem:[#allocation3 + $0x50] sm:$0xff]
    %v1503 = vld [vmem:[#allocation3 + $0x58] sm:$0xff]
    %v1505 = vsel %vm296, %v1492, 0
    %v1508 = vsel %vm296, %v1493, 0
    %v1511 = vsel %vm296, %v1494, 0
    %v1514 = vsel %vm296, %v1495, 0
    %v1517 = vsel %vm296, %v1496, 0
    %v1520 = vsel %vm296, %v1497, 0
    %v1523 = vsel %vm296, %v1498, 0
    %v1526 = vsel %vm296, %v1499, 0
    %v1529 = vsel %vm296, %v1500, 0
    %v1532 = vsel %vm296, %v1501, 0
    %v1535 = vsel %vm296, %v1502, 0
    %v1538 = vsel %vm296, %v1503, 0
    %1540 = vmatprep.subr.mxu0 0.0
    %1541 = vmatpush1.msra.mxu0 %v1483
    %1542 = vmatprep.subr.mxu0 0.0
    %1543 = vmatpush1.msra.mxu0 %v1484
    %1544 = vmatprep.subr.mxu0 0.0
    %1545 = vmatpush1.msra.mxu0 %v1485
    %1546 = vmatprep.subr.mxu0 0.0
    %1547 = vmatpush1.msra.mxu0 %v1486
    %1548 = vmatprep.subr.mxu0 0.0
    %1549 = vmatpush1.msra.mxu0 %v1487
    %1550 = vmatprep.subr.mxu0 0.0
    %1551 = vmatpush1.msra.mxu0 %v1488
    %1552 = vmatprep.subr.mxu0 0.0
    %1553 = vmatpush1.msra.mxu0 %v1489
    %1554 = vmatprep.subr.mxu0 0.0
    %1555 = vmatpush1.msra.mxu0 %v1490
    %1556 = vmatprep.subr.mxu0 0.0
    %1557 = vmatpush1.msra.mxu0 0.0
    %1558 = vmatprep.subr.mxu0 0.0
    %1559 = vmatpush1.msra.mxu0 0.0
    %1560 = vmatprep.subr.mxu0 0.0
    %1561 = vmatpush1.msra.mxu0 0.0
    %1562 = vmatprep.subr.mxu0 0.0
    %1563 = vmatpush1.msra.mxu0 0.0
    %1564 = vmatprep.subr.mxu0 0.0
    %1565 = vmatpush1.msra.mxu0 0.0
    %1566 = vmatprep.subr.mxu0 0.0
    %1567 = vmatpush1.msra.mxu0 0.0
    %1568 = vmatprep.subr.mxu0 0.0
    %1569 = vmatpush1.msra.mxu0 0.0
    %1570 = vmatprep.subr.mxu0 0.0
    %1571 = vmatpush1.msra.mxu0 0.0
    %1572 = vmatprep.subr.mxu0 0.0
    %1573 = vmatpush1.msra.mxu0 0.0
    %1574 = vmatprep.subr.mxu0 0.0
    %1575 = vmatpush1.msra.mxu0 0.0
    %1576 = vmatprep.subr.mxu0 0.0
    %1577 = vmatpush1.msra.mxu0 0.0
    %1578 = vmatprep.subr.mxu0 0.0
    %1579 = vmatpush1.msra.mxu0 0.0
    %1580 = vmatprep.subr.mxu0 0.0
    %1581 = vmatpush1.msra.mxu0 0.0
    %1582 = vmatprep.subr.mxu0 0.0
    %1583 = vmatpush1.msra.mxu0 0.0
    %1584 = vmatprep.subr.mxu0 0.0
    %1585 = vmatpush1.msra.mxu0 0.0
    %1586 = vmatprep.subr.mxu0 0.0
    %1587 = vmatpush1.msra.mxu0 0.0
    %1588 = vmatprep.subr.mxu0 0.0
    %1589 = vmatpush1.msra.mxu0 0.0
    %1590 = vmatprep.subr.mxu0 0.0
    %1591 = vmatpush1.msra.mxu0 0.0
    %1592 = vmatprep.subr.mxu0 0.0
    %1593 = vmatpush1.msra.mxu0 0.0
    %1594 = vmatprep.subr.mxu0 0.0
    %1595 = vmatpush1.msra.mxu0 0.0
    %1596 = vmatprep.subr.mxu0 0.0
    %1597 = vmatpush1.msra.mxu0 0.0
    %1598 = vmatprep.subr.mxu0 0.0
    %1599 = vmatpush1.msra.mxu0 0.0
    %1600 = vmatprep.subr.mxu0 0.0
    %1601 = vmatpush1.msra.mxu0 0.0
    %1602 = vmatprep.subr.mxu0 0.0
    %1603 = vmatpush1.msra.mxu0 0.0
    %1604 = vmatprep.mubr.f32.mxu0 0.0
    %1605 = vmatmul.mubr.f32.gmra.mrb[0].mxu0 %v1505
    %v1606 = vpop.f32.mrb[0].mxu0
    %v1607 = vadd.f32 %v1491, %v1606
    %v1608 = vpop.f32.mrb[0].mxu0
    %1609 = vmatprep.mubr.f32.mxu0 0.0
    %1610 = vmatmul.mubr.f32.gmra.mrb[0].mxu0 %v1508
    %v1611 = vpop.f32.mrb[0].mxu0
    %v1612 = vadd.f32 %v1491, %v1611
    %v1613 = vpop.f32.mrb[0].mxu0
    %1614 = vmatprep.mubr.f32.mxu0 0.0
    %1615 = vmatmul.mubr.f32.gmra.mrb[0].mxu0 %v1511
    %v1616 = vpop.f32.mrb[0].mxu0
    %v1617 = vadd.f32 %v1491, %v1616
    %v1618 = vpop.f32.mrb[0].mxu0
    %1619 = vmatprep.mubr.f32.mxu0 0.0
    %1620 = vmatmul.mubr.f32.gmra.mrb[0].mxu0 %v1514
    %v1621 = vpop.f32.mrb[0].mxu0
    %v1622 = vadd.f32 %v1491, %v1621
    %v1623 = vpop.f32.mrb[0].mxu0
    %1624 = vmatprep.mubr.f32.mxu0 0.0
    %1625 = vmatmul.mubr.f32.gmra.mrb[0].mxu0 %v1517
    %v1626 = vpop.f32.mrb[0].mxu0
    %v1627 = vadd.f32 %v1491, %v1626
    %v1628 = vpop.f32.mrb[0].mxu0
    %1629 = vmatprep.mubr.f32.mxu0 0.0
    %1630 = vmatmul.mubr.f32.gmra.mrb[0].mxu0 %v1520
    %v1631 = vpop.f32.mrb[0].mxu0
    %v1632 = vadd.f32 %v1491, %v1631
    %v1633 = vpop.f32.mrb[0].mxu0
    %1634 = vmatprep.mubr.f32.mxu0 0.0
    %1635 = vmatmul.mubr.f32.gmra.mrb[0].mxu0 %v1523
    %v1636 = vpop.f32.mrb[0].mxu0
    %v1637 = vadd.f32 %v1491, %v1636
    %v1638 = vpop.f32.mrb[0].mxu0
    %1639 = vmatprep.mubr.f32.mxu0 0.0
    %1640 = vmatmul.mubr.f32.gmra.mrb[0].mxu0 %v1526
    %v1641 = vpop.f32.mrb[0].mxu0
    %v1642 = vadd.f32 %v1491, %v1641
    %v1643 = vpop.f32.mrb[0].mxu0
    %1644 = vmatprep.mubr.f32.mxu0 0.0
    %1645 = vmatmul.mubr.f32.gmra.mrb[0].mxu0 %v1529
    %v1646 = vpop.f32.mrb[0].mxu0
    %v1647 = vadd.f32 %v1491, %v1646
    %v1648 = vpop.f32.mrb[0].mxu0
    %1649 = vmatprep.mubr.f32.mxu0 0.0
    %1650 = vmatmul.mubr.f32.gmra.mrb[0].mxu0 %v1532
    %v1651 = vpop.f32.mrb[0].mxu0
    %v1652 = vadd.f32 %v1491, %v1651
    %v1653 = vpop.f32.mrb[0].mxu0
    %1654 = vmatprep.mubr.f32.mxu0 0.0
    %1655 = vmatmul.mubr.f32.gmra.mrb[0].mxu0 %v1535
    %v1656 = vpop.f32.mrb[0].mxu0
    %v1657 = vadd.f32 %v1491, %v1656
    %v1658 = vpop.f32.mrb[0].mxu0
    %1659 = vmatprep.mubr.f32.mxu0 0.0
    %1660 = vmatmul.mubr.f32.gmra.mrb[0].mxu0 %v1538
    %v1661 = vpop.f32.mrb[0].mxu0
    %v1662 = vadd.f32 %v1491, %v1661
    %v1663 = vpop.f32.mrb[0].mxu0
    %1664 = vdwg.mxu0
    %v1665 = vmax.f32 %v1607, 0.0
    %v1666 = vmax.f32 %v1612, 0.0
    %v1667 = vmax.f32 %v1617, 0.0
    %v1668 = vmax.f32 %v1622, 0.0
    %v1669 = vmax.f32 %v1627, 0.0
    %v1670 = vmax.f32 %v1632, 0.0
    %v1671 = vmax.f32 %v1637, 0.0
    %v1672 = vmax.f32 %v1642, 0.0
    %v1673 = vmax.f32 %v1647, 0.0
    %v1674 = vmax.f32 %v1652, 0.0
    %v1675 = vmax.f32 %v1657, 0.0
    %v1676 = vmax.f32 %v1662, 0.0
    %1677 = vst [vmem:[%s2] sm:$0xff] %v1665
    %1678 = vst [vmem:[%s2 + $0x8] sm:$0xff] %v1666
    %1679 = vst [vmem:[%s2 + $0x10] sm:$0xff] %v1667
    %1680 = vst [vmem:[%s2 + $0x18] sm:$0xff] %v1668
    %1681 = vst [vmem:[%s2 + $0x20] sm:$0xff] %v1669
    %1682 = vst [vmem:[%s2 + $0x28] sm:$0xff] %v1670
    %1683 = vst [vmem:[%s2 + $0x30] sm:$0xff] %v1671
    %1684 = vst [vmem:[%s2 + $0x38] sm:$0xff] %v1672
    %1685 = vst [vmem:[%s2 + $0x40] sm:$0xff] %v1673
    %1686 = vst [vmem:[%s2 + $0x48] sm:$0xff] %v1674
    %1687 = vst [vmem:[%s2 + $0x50] sm:$0xff] %v1675
    %1688 = vst [vmem:[%s2 + $0x58] sm:$0xff] %v1676
    // Predicated region
    $region14: #{oil_forward.1} parent=1 // pred_check
      _
    $region15: #{oil_forward.1} parent=1 // pred_check_branch
      %1690 = sbr.rel (0) target = $region17
    $region16: #{oil_forward.1} parent=1 // pred_region
      _
    $region17: #{oil_forward.1} parent=1 // pred_fallthru
      _
    // Predicated region
    $region18: #{oil_forward.1} parent=1 // pred_check
      _
    $region19: #{oil_forward.1} parent=1 // pred_check_branch
      %1692 = sbr.rel (0) target = $region21
    $region20: #{oil_forward.1} parent=1 // pred_region
      _
    $region21: #{oil_forward.1} parent=1 // pred_fallthru
      _
    %1693 = vsyncpa [#allocation5], 1

</llo_original>
